<compile_context>
chip_gen: v5e
topology: v5e:2x2
jax: 0.10.0
libtpu: 0.0.40
codegen_flags: <defaults>
</compile_context>

<pallas_src>
import math
from functools import partial

import jax
import jax.numpy as jnp
from jax import lax
from jax.experimental import pallas as pl
from jax.experimental.pallas import tpu as pltpu


# ----------------------- Kernel 1: fused QKV projection -----------------------

def _qkv_projection_kernel(x_ref, wqkv_ref, bqkv_ref, q_ref, k_ref, v_ref, *,
                           num_heads, d_k, compute_dtype):
    """x(tile) @ [Wq*scale | Wk | Wv] + b, split into head-major q/k/v tiles."""
    d_model = num_heads * d_k
    x = x_ref[0].astype(compute_dtype)                           # (tm, d_model)
    # One fused MXU matmul for Q|K|V; f32 accumulation, f32 bias add.
    qkv = jnp.dot(x, wqkv_ref[...], preferred_element_type=jnp.float32)
    qkv = qkv + bqkv_ref[...]                                    # (tm, 3*d_model)
    # split_heads: static lane slices stored into head-major (H, tm, d_k)
    # outputs (replaces the XLA-level view/transpose over HBM).
    for h in range(num_heads):
        lo = h * d_k
        q_ref[0, h] = qkv[:, lo:lo + d_k].astype(q_ref.dtype)
        k_ref[0, h] = qkv[:, d_model + lo:d_model + lo + d_k].astype(k_ref.dtype)
        v_ref[0, h] = qkv[:, 2 * d_model + lo:2 * d_model + lo + d_k].astype(v_ref.dtype)


def _qkv_projection(x, wqkv, bqkv, *, num_heads, tm, compute_dtype):
    B, S, d_model = x.shape
    d_k = d_model // num_heads
    assert S % tm == 0
    c_item = jnp.dtype(compute_dtype).itemsize

    # Block footprint: streamed tiles double-buffered, weights single-buffered.
    vmem_bytes = (2 * tm * d_model * x.dtype.itemsize            # x
                  + d_model * 3 * d_model * c_item               # Wqkv (1 buf)
                  + 3 * d_model * 4                              # bqkv  (1 buf)
                  + 2 * 3 * tm * d_model * c_item                # q,k,v out
                  + tm * 3 * d_model * 4)                        # f32 qkv temp
    vmem_limit = int(min(max(2 * vmem_bytes, 32 << 20), 64 << 20))

    # TODO(synk): at large d_model, also tile the projection over N/K grid axes
    # with a small f32 VMEM accumulator instead of whole-weight blocks.
    qkv_shape = jax.ShapeDtypeStruct((B, num_heads, S, d_k), compute_dtype)
    return pl.pallas_call(
        partial(_qkv_projection_kernel, num_heads=num_heads, d_k=d_k,
                compute_dtype=compute_dtype),
        out_shape=(qkv_shape, qkv_shape, qkv_shape),
        grid=(B, S // tm),
        in_specs=[
            pl.BlockSpec((1, tm, d_model), lambda b, i: (b, i, 0)),
            # Invariant operands: single-buffered (index_map is constant).
            pl.BlockSpec((d_model, 3 * d_model), lambda b, i: (0, 0),
                         pipeline_mode=pl.Buffered(1)),
            pl.BlockSpec((1, 3 * d_model), lambda b, i: (0, 0),
                         pipeline_mode=pl.Buffered(1)),
        ],
        out_specs=(
            pl.BlockSpec((1, num_heads, tm, d_k), lambda b, i: (b, 0, i, 0)),
            pl.BlockSpec((1, num_heads, tm, d_k), lambda b, i: (b, 0, i, 0)),
            pl.BlockSpec((1, num_heads, tm, d_k), lambda b, i: (b, 0, i, 0)),
        ),
        compiler_params=pltpu.CompilerParams(
            dimension_semantics=("parallel", "parallel"),
            vmem_limit_bytes=vmem_limit,
        ),
        cost_estimate=pl.CostEstimate(
            flops=2 * B * S * d_model * 3 * d_model,
            transcendentals=0,
            bytes_accessed=int(x.size * x.dtype.itemsize
                               + wqkv.size * wqkv.dtype.itemsize
                               + bqkv.size * bqkv.dtype.itemsize
                               + 3 * B * S * d_model * c_item),
        ),
    )(x, wqkv, bqkv)


# ---------------- Kernel 2: flash attention + output projection ---------------

def _flash_attention_kernel(q_ref, k_ref, v_ref, wo_ref, bo_ref, o_ref,
                            m_sc, l_sc, acc_sc, *, compute_dtype):
    kv = pl.program_id(2)

    @pl.when(kv == 0)
    def _():
        m_sc[...] = jnp.full_like(m_sc, -jnp.inf)
        l_sc[...] = jnp.zeros_like(l_sc)
        acc_sc[...] = jnp.zeros_like(acc_sc)

    q = q_ref[0]                                   # (H, tq, d_k) compute_dtype
    k = k_ref[0]                                   # (H, tk, d_k)
    v = v_ref[0]                                   # (H, tk, d_k)

    # One head-batched MXU contraction for the scores (q already carries the
    # 1/sqrt(d_k) factor folded into Wq at weight-prep time).
    s = lax.dot_general(q, k, (((2,), (2,)), ((0,), (0,))),
                        preferred_element_type=jnp.float32)      # (H, tq, tk)

    # Online-softmax update; all elementwise math in f32 (VPU/EUP friendly on
    # every generation, incl. v5e which has no bf16 VPU path).
    m_prev = m_sc[...]
    m_new = jnp.maximum(m_prev, jnp.max(s, axis=-1, keepdims=True))
    alpha = jnp.exp(m_prev - m_new)                               # EUP
    p = jnp.exp(s - m_new)                                        # EUP
    l_sc[...] = alpha * l_sc[...] + jnp.sum(p, axis=-1, keepdims=True)
    pv = lax.dot_general(p.astype(compute_dtype), v,
                         (((2,), (1,)), ((0,), (0,))),
                         preferred_element_type=jnp.float32)      # (H, tq, d_k)
    acc_sc[...] = alpha * acc_sc[...] + pv
    m_sc[...] = m_new

    # TODO(synk): attention_mask / causal masking path not implemented
    # (forward is exercised with mask=None, matching the module's default).

    @pl.when(kv == pl.num_programs(2) - 1)
    def _():
        inv = pl.reciprocal(l_sc[...], approx=True)               # EUP, (H,tq,1)
        attn = (acc_sc[...] * inv).astype(compute_dtype)          # (H, tq, d_k)
        # concatenate_heads + Wout fused: Wo is pre-reshaped to (H, d_k,
        # d_model), so one head-batched matmul + a cheap reduce over H replaces
        # the concat/relayout followed by a (tq,d_model)x(d_model,d_model) GEMM.
        per_head = lax.dot_general(attn, wo_ref[...],
                                   (((2,), (1,)), ((0,), (0,))),
                                   preferred_element_type=jnp.float32)
        out = jnp.sum(per_head, axis=0) + bo_ref[...]             # (tq, d_model)
        o_ref[0] = out.astype(o_ref.dtype)


def _flash_attention(q, k, v, wo3, bo, *, tq, tk, out_dtype):
    B, H, S, d_k = q.shape
    d_model = H * d_k
    assert S % tq == 0 and S % tk == 0
    c_item = q.dtype.itemsize

    vmem_bytes = (2 * H * tq * d_k * c_item                       # q (2 bufs)
                  + 2 * 2 * H * tk * d_k * c_item                 # k, v (2 bufs)
                  + H * d_k * d_model * wo3.dtype.itemsize        # Wo (1 buf)
                  + d_model * 4                                   # bo (1 buf)
                  + 2 * tq * d_model * jnp.dtype(out_dtype).itemsize  # out
                  + H * tq * (d_k + 2) * 4                        # m/l/acc scratch
                  + H * tq * tk * 4                               # f32 score tile
                  + H * tq * d_model * 4)                         # out-proj temp
    vmem_limit = int(min(max(2 * vmem_bytes, 32 << 20), 64 << 20))

    return pl.pallas_call(
        partial(_flash_attention_kernel, compute_dtype=q.dtype),
        out_shape=jax.ShapeDtypeStruct((B, S, d_model), out_dtype),
        grid=(B, S // tq, S // tk),
        in_specs=[
            pl.BlockSpec((1, H, tq, d_k), lambda b, qi, ki: (b, 0, qi, 0)),
            pl.BlockSpec((1, H, tk, d_k), lambda b, qi, ki: (b, 0, ki, 0)),
            pl.BlockSpec((1, H, tk, d_k), lambda b, qi, ki: (b, 0, ki, 0)),
            pl.BlockSpec((H, d_k, d_model), lambda b, qi, ki: (0, 0, 0),
                         pipeline_mode=pl.Buffered(1)),
            pl.BlockSpec((1, d_model), lambda b, qi, ki: (0, 0),
                         pipeline_mode=pl.Buffered(1)),
        ],
        out_specs=pl.BlockSpec((1, tq, d_model), lambda b, qi, ki: (b, qi, 0)),
        scratch_shapes=[
            pltpu.VMEM((H, tq, 1), jnp.float32),      # running max  m
            pltpu.VMEM((H, tq, 1), jnp.float32),      # running sum  l
            pltpu.VMEM((H, tq, d_k), jnp.float32),    # output accumulator
        ],
        compiler_params=pltpu.CompilerParams(
            dimension_semantics=("parallel", "parallel", "arbitrary"),
            vmem_limit_bytes=vmem_limit,
        ),
        cost_estimate=pl.CostEstimate(
            flops=B * (4 * S * S * d_model + 2 * S * d_model * d_model),
            transcendentals=B * H * S * S,
            bytes_accessed=int(3 * q.size * c_item
                               + wo3.size * wo3.dtype.itemsize + bo.size * 4
                               + B * S * d_model * jnp.dtype(out_dtype).itemsize),
        ),
    )(q, k, v, wo3, bo)


# ------------------------------- Forward wrapper -------------------------------

def attention_forward(prepared, hidden_states, *, num_heads,
                      tq=256, tk=512, tm=256):
    """hidden_states: (B, S, d_model) -> (B, S, d_model)."""
    B, S, d_model = hidden_states.shape
    compute_dtype = prepared["wqkv"].dtype
    tm, tq, tk = min(tm, S), min(tq, S), min(tk, S)
    # TODO(synk): ragged S (not divisible by the tile) needs a kv-length mask
    # inside the online softmax; tiles are currently required to divide S.
    assert S % tm == 0 and S % tq == 0 and S % tk == 0

    q, k, v = _qkv_projection(hidden_states, prepared["wqkv"], prepared["bqkv"],
                              num_heads=num_heads, tm=tm,
                              compute_dtype=compute_dtype)
    return _flash_attention(q, k, v, prepared["wo3"], prepared["bo"],
                            tq=tq, tk=tk, out_dtype=hidden_states.dtype)


# --------------------------- One-time parameter prep ---------------------------

def prepare_attention_params(params, num_heads, compute_dtype=jnp.bfloat16):
    """Hoisted out of the per-call path: fuse Wq|Wk|Wv, fold the 1/sqrt(d_k)
    softmax scale into Wq/bq, cast MXU operands (bf16 default), reshape Wo
    head-major. Biases stay f32 (added after the f32 accumulation)."""
    d_model = params["wq"].shape[0]
    d_k = d_model // num_heads
    scale = 1.0 / math.sqrt(float(d_k))
    wqkv = jnp.concatenate([params["wq"] * scale, params["wk"], params["wv"]],
                           axis=1).astype(compute_dtype)
    bqkv = jnp.concatenate([params["bq"] * scale, params["bk"], params["bv"]],
                           axis=1).astype(jnp.float32)
    wo3 = params["wo"].reshape(num_heads, d_k, d_model).astype(compute_dtype)
    return dict(wqkv=wqkv, bqkv=bqkv, wo3=wo3,
                bo=params["bo"].astype(jnp.float32))


def init_attention_params(key, d_model):
    """Deterministic init (shapes match nn.Linear(d_model, d_model); weights
    stored (in_features, out_features) so the kernel computes x @ W + b)."""
    keys = jax.random.split(key, 8)
    bound = 1.0 / math.sqrt(d_model)

    def lin(kw, kb):
        w = jax.random.uniform(kw, (d_model, d_model), jnp.float32, -bound, bound)
        b = jax.random.uniform(kb, (1, d_model), jnp.float32, -bound, bound)
        return w, b

    wq, bq = lin(keys[0], keys[1])
    wk, bk = lin(keys[2], keys[3])
    wv, bv = lin(keys[4], keys[5])
    wo, bo = lin(keys[6], keys[7])
    return dict(wq=wq, bq=bq, wk=wk, bk=bk, wv=wv, bv=bv, wo=wo, bo=bo)


# ------------------------------------ Main -------------------------------------

if __name__ == "__main__":
    B, S, d_model, num_heads = 2, 8, 32, 4
    # TODO(synk): realistic d_model should be a multiple of 128 so the output
    # block stays lane-dense (avoids masked partial stores, esp. on v5e).

    key = jax.random.PRNGKey(0)
    k_params, k_input = jax.random.split(key)
    params = init_attention_params(k_params, d_model)
    hidden_states = jax.random.normal(k_input, (B, S, d_model), jnp.float32)

    # Pure-JAX reference of the module's forward (mask=None path).
    def ref_forward(p, x):
        q = x @ p["wq"] + p["bq"]
        k = x @ p["wk"] + p["bk"]
        v = x @ p["wv"] + p["bv"]
        d_k = d_model // num_heads

        def split(t):
            return t.reshape(B, S, num_heads, d_k).transpose(0, 2, 1, 3)

        q, k, v = split(q), split(k), split(v)
        s = jnp.einsum("bhqd,bhkd->bhqk", q, k) / jnp.sqrt(jnp.float32(d_k))
        p_attn = jax.nn.softmax(s, axis=-1)
        a = jnp.einsum("bhqk,bhkd->bhqd", p_attn, v)
        a = a.transpose(0, 2, 1, 3).reshape(B, S, d_model)
        return a @ p["wo"] + p["bo"]

    ref = ref_forward(params, hidden_states)

    fwd = jax.jit(partial(attention_forward, num_heads=num_heads))

    # Default path: bf16 MXU operands, f32 accumulation & f32 softmax math.
    prepared_bf16 = prepare_attention_params(params, num_heads, jnp.bfloat16)
    out_bf16 = jax.block_until_ready(fwd(prepared_bf16, hidden_states))
    assert jnp.allclose(out_bf16, ref, atol=5e-2, rtol=5e-2), \
        "bf16 path mismatch vs reference"

    # f32 MXU path (tight tolerance; approx reciprocal still used in softmax).
    prepared_f32 = prepare_attention_params(params, num_heads, jnp.float32)
    out_f32 = jax.block_until_ready(fwd(prepared_f32, hidden_states))
    assert jnp.allclose(out_f32, ref, atol=5e-3, rtol=5e-3), \
        "f32 path mismatch vs reference"

    print("KERNEL_OK")
</pallas_src>

<mosaic_0001>
module attributes {stable_mosaic.version = 11 : i64} {
  func.func @_flash_attention_kernel(%arg0: i32, %arg1: i32, %arg2: i32, %arg3: memref<1x4x8x8xbf16, #tpu.memory_space<vmem>>, %arg4: memref<1x4x8x8xbf16, #tpu.memory_space<vmem>>, %arg5: memref<1x4x8x8xbf16, #tpu.memory_space<vmem>>, %arg6: memref<4x8x32xbf16, #tpu.memory_space<vmem>>, %arg7: memref<1x32xf32, #tpu.memory_space<vmem>>, %arg8: memref<1x8x32xf32, #tpu.memory_space<vmem>>, %arg9: memref<4x8x1xf32, #tpu.memory_space<vmem>>, %arg10: memref<4x8x1xf32, #tpu.memory_space<vmem>>, %arg11: memref<4x8x8xf32, #tpu.memory_space<vmem>>) attributes {dimension_semantics = [#tpu.dimension_semantics<parallel>, #tpu.dimension_semantics<parallel>, #tpu.dimension_semantics<arbitrary>], iteration_bounds = array<i64: 2, 1, 1>, scalar_prefetch = 0 : i64, scratch_operands = 3 : i64, tpu.core_type = #tpu.core_type<tc>, window_params = [{transform_indices = @transform_0, window_bounds = array<i64: 1, 4, 8, 8>}, {transform_indices = @transform_1, window_bounds = array<i64: 1, 4, 8, 8>}, {transform_indices = @transform_2, window_bounds = array<i64: 1, 4, 8, 8>}, {pipeline_mode = #tpu.pipeline_mode<synchronous>, transform_indices = @transform_3, window_bounds = array<i64: 4, 8, 32>}, {pipeline_mode = #tpu.pipeline_mode<synchronous>, transform_indices = @transform_4, window_bounds = array<i64: 1, 32>}, {transform_indices = @transform_5, window_bounds = array<i64: 1, 8, 32>}]} {
    %c0_i32 = arith.constant 0 : i32
    %0 = arith.cmpi eq, %arg2, %c0_i32 : i32
    %1 = arith.extui %0 : i1 to i32
    %c0_i32_0 = arith.constant 0 : i32
    %2 = arith.cmpi ne, %1, %c0_i32_0 : i32
    scf.if %2 {
      %cst_35 = arith.constant 0xFF800000 : f32
      %36 = vector.broadcast %cst_35 : f32 to vector<4x8x1xf32>
      %c0_36 = arith.constant 0 : index
      %c0_37 = arith.constant 0 : index
      %c0_38 = arith.constant 0 : index
      %37 = vector.load %arg9[%c0_36, %c0_37, %c0_38] : memref<4x8x1xf32, #tpu.memory_space<vmem>>, vector<4x8x1xf32>
      tpu.vector_store %arg9[%c0_36, %c0_37, %c0_38], %36 {strides = array<i32>} : memref<4x8x1xf32, #tpu.memory_space<vmem>>, vector<4x8x1xf32>,
      %cst_39 = arith.constant 0.000000e+00 : f32
      %38 = vector.broadcast %cst_39 : f32 to vector<4x8x1xf32>
      %c0_40 = arith.constant 0 : index
      %c0_41 = arith.constant 0 : index
      %c0_42 = arith.constant 0 : index
      %39 = vector.load %arg10[%c0_40, %c0_41, %c0_42] : memref<4x8x1xf32, #tpu.memory_space<vmem>>, vector<4x8x1xf32>
      tpu.vector_store %arg10[%c0_40, %c0_41, %c0_42], %38 {strides = array<i32>} : memref<4x8x1xf32, #tpu.memory_space<vmem>>, vector<4x8x1xf32>,
      %cst_43 = arith.constant 0.000000e+00 : f32
      %40 = vector.broadcast %cst_43 : f32 to vector<4x8x8xf32>
      %c0_44 = arith.constant 0 : index
      %c0_45 = arith.constant 0 : index
      %c0_46 = arith.constant 0 : index
      %41 = vector.load %arg11[%c0_44, %c0_45, %c0_46] : memref<4x8x8xf32, #tpu.memory_space<vmem>>, vector<4x8x8xf32>
      tpu.vector_store %arg11[%c0_44, %c0_45, %c0_46], %40 {strides = array<i32>} : memref<4x8x8xf32, #tpu.memory_space<vmem>>, vector<4x8x8xf32>,
    } else {
    }
    %c0 = arith.constant 0 : index
    %c0_1 = arith.constant 0 : index
    %c0_2 = arith.constant 0 : index
    %c0_3 = arith.constant 0 : index
    %3 = vector.load %arg3[%c0, %c0_1, %c0_2, %c0_3] : memref<1x4x8x8xbf16, #tpu.memory_space<vmem>>, vector<1x4x8x8xbf16>
    %4 = vector.shape_cast %3 : vector<1x4x8x8xbf16> to vector<4x8x8xbf16>
    %c0_4 = arith.constant 0 : index
    %c0_5 = arith.constant 0 : index
    %c0_6 = arith.constant 0 : index
    %c0_7 = arith.constant 0 : index
    %5 = vector.load %arg4[%c0_4, %c0_5, %c0_6, %c0_7] : memref<1x4x8x8xbf16, #tpu.memory_space<vmem>>, vector<1x4x8x8xbf16>
    %6 = vector.shape_cast %5 : vector<1x4x8x8xbf16> to vector<4x8x8xbf16>
    %c0_8 = arith.constant 0 : index
    %c0_9 = arith.constant 0 : index
    %c0_10 = arith.constant 0 : index
    %c0_11 = arith.constant 0 : index
    %7 = vector.load %arg5[%c0_8, %c0_9, %c0_10, %c0_11] : memref<1x4x8x8xbf16, #tpu.memory_space<vmem>>, vector<1x4x8x8xbf16>
    %8 = vector.shape_cast %7 : vector<1x4x8x8xbf16> to vector<4x8x8xbf16>
    %cst = arith.constant dense<0.000000e+00> : vector<4x8x8xf32>
    %9 = tpu.matmul %4, %6, %cst {dimension_numbers = #tpu.dot_dimension_numbers<[2], [2], [1], [1], [0, 0, 0, 1, 1, 1], [0], [0]>} : vector<4x8x8xbf16>, vector<4x8x8xbf16>, vector<4x8x8xf32> -> vector<4x8x8xf32>
    %c0_12 = arith.constant 0 : index
    %c0_13 = arith.constant 0 : index
    %c0_14 = arith.constant 0 : index
    %10 = vector.load %arg9[%c0_12, %c0_13, %c0_14] : memref<4x8x1xf32, #tpu.memory_space<vmem>>, vector<4x8x1xf32>
    %cst_15 = arith.constant dense<0xFF800000> : vector<4x8xf32>
    %11 = vector.multi_reduction <maximumf>, %9, %cst_15 [2] : vector<4x8x8xf32> to vector<4x8xf32>
    %12 = vector.shape_cast %11 : vector<4x8xf32> to vector<4x8x1xf32>
    %13 = arith.maximumf %10, %12 : vector<4x8x1xf32>
    %14 = arith.subf %10, %13 : vector<4x8x1xf32>
    %15 = math.exp %14 : vector<4x8x1xf32>
    %16 = vector.broadcast %13 : vector<4x8x1xf32> to vector<4x8x8xf32>
    %17 = arith.subf %9, %16 : vector<4x8x8xf32>
    %18 = math.exp %17 : vector<4x8x8xf32>
    %c0_16 = arith.constant 0 : index
    %c0_17 = arith.constant 0 : index
    %c0_18 = arith.constant 0 : index
    %19 = vector.load %arg10[%c0_16, %c0_17, %c0_18] : memref<4x8x1xf32, #tpu.memory_space<vmem>>, vector<4x8x1xf32>
    %20 = arith.mulf %15, %19 : vector<4x8x1xf32>
    %cst_19 = arith.constant dense<0.000000e+00> : vector<4x8xf32>
    %21 = vector.multi_reduction <add>, %18, %cst_19 [2] : vector<4x8x8xf32> to vector<4x8xf32>
    %22 = vector.shape_cast %21 : vector<4x8xf32> to vector<4x8x1xf32>
    %23 = arith.addf %20, %22 : vector<4x8x1xf32>
    %c0_20 = arith.constant 0 : index
    %c0_21 = arith.constant 0 : index
    %c0_22 = arith.constant 0 : index
    %24 = vector.load %arg10[%c0_20, %c0_21, %c0_22] : memref<4x8x1xf32, #tpu.memory_space<vmem>>, vector<4x8x1xf32>
    tpu.vector_store %arg10[%c0_20, %c0_21, %c0_22], %23 {strides = array<i32>} : memref<4x8x1xf32, #tpu.memory_space<vmem>>, vector<4x8x1xf32>,
    %25 = arith.truncf %18 : vector<4x8x8xf32> to vector<4x8x8xbf16>
    %cst_23 = arith.constant dense<0.000000e+00> : vector<4x8x8xf32>
    %26 = tpu.matmul %25, %8, %cst_23 {dimension_numbers = #tpu.dot_dimension_numbers<[2], [1], [1], [2], [0, 0, 0, 1, 1, 2], [0], [0]>} : vector<4x8x8xbf16>, vector<4x8x8xbf16>, vector<4x8x8xf32> -> vector<4x8x8xf32>
    %c0_24 = arith.constant 0 : index
    %c0_25 = arith.constant 0 : index
    %c0_26 = arith.constant 0 : index
    %27 = vector.load %arg11[%c0_24, %c0_25, %c0_26] : memref<4x8x8xf32, #tpu.memory_space<vmem>>, vector<4x8x8xf32>
    %28 = vector.broadcast %15 : vector<4x8x1xf32> to vector<4x8x8xf32>
    %29 = arith.mulf %28, %27 : vector<4x8x8xf32>
    %30 = arith.addf %29, %26 : vector<4x8x8xf32>
    %c0_27 = arith.constant 0 : index
    %c0_28 = arith.constant 0 : index
    %c0_29 = arith.constant 0 : index
    %31 = vector.load %arg11[%c0_27, %c0_28, %c0_29] : memref<4x8x8xf32, #tpu.memory_space<vmem>>, vector<4x8x8xf32>
    tpu.vector_store %arg11[%c0_27, %c0_28, %c0_29], %30 {strides = array<i32>} : memref<4x8x8xf32, #tpu.memory_space<vmem>>, vector<4x8x8xf32>,
    %c0_30 = arith.constant 0 : index
    %c0_31 = arith.constant 0 : index
    %c0_32 = arith.constant 0 : index
    %32 = vector.load %arg9[%c0_30, %c0_31, %c0_32] : memref<4x8x1xf32, #tpu.memory_space<vmem>>, vector<4x8x1xf32>
    tpu.vector_store %arg9[%c0_30, %c0_31, %c0_32], %13 {strides = array<i32>} : memref<4x8x1xf32, #tpu.memory_space<vmem>>, vector<4x8x1xf32>,
    %c0_i32_33 = arith.constant 0 : i32
    %33 = arith.cmpi eq, %arg2, %c0_i32_33 : i32
    %34 = arith.extui %33 : i1 to i32
    %c0_i32_34 = arith.constant 0 : i32
    %35 = arith.cmpi ne, %34, %c0_i32_34 : i32
    scf.if %35 {
      %c0_35 = arith.constant 0 : index
      %c0_36 = arith.constant 0 : index
      %c0_37 = arith.constant 0 : index
      %36 = vector.load %arg10[%c0_35, %c0_36, %c0_37] : memref<4x8x1xf32, #tpu.memory_space<vmem>>, vector<4x8x1xf32>
      %37 = tpu.reciprocal %36 {approx = true} : vector<4x8x1xf32> -> vector<4x8x1xf32>
      %c0_38 = arith.constant 0 : index
      %c0_39 = arith.constant 0 : index
      %c0_40 = arith.constant 0 : index
      %38 = vector.load %arg11[%c0_38, %c0_39, %c0_40] : memref<4x8x8xf32, #tpu.memory_space<vmem>>, vector<4x8x8xf32>
      %39 = vector.broadcast %37 : vector<4x8x1xf32> to vector<4x8x8xf32>
      %40 = arith.mulf %38, %39 : vector<4x8x8xf32>
      %41 = arith.truncf %40 : vector<4x8x8xf32> to vector<4x8x8xbf16>
      %c0_41 = arith.constant 0 : index
      %c0_42 = arith.constant 0 : index
      %c0_43 = arith.constant 0 : index
      %42 = vector.load %arg6[%c0_41, %c0_42, %c0_43] : memref<4x8x32xbf16, #tpu.memory_space<vmem>>, vector<4x8x32xbf16>
      %cst_44 = arith.constant dense<0.000000e+00> : vector<4x8x32xf32>
      %43 = tpu.matmul %41, %42, %cst_44 {dimension_numbers = #tpu.dot_dimension_numbers<[2], [1], [1], [2], [0, 0, 0, 1, 1, 2], [0], [0]>} : vector<4x8x8xbf16>, vector<4x8x32xbf16>, vector<4x8x32xf32> -> vector<4x8x32xf32>
      %cst_45 = arith.constant dense<0.000000e+00> : vector<8x32xf32>
      %44 = vector.multi_reduction <add>, %43, %cst_45 [0] : vector<4x8x32xf32> to vector<8x32xf32>
      %c0_46 = arith.constant 0 : index
      %c0_47 = arith.constant 0 : index
      %45 = vector.load %arg7[%c0_46, %c0_47] : memref<1x32xf32, #tpu.memory_space<vmem>>, vector<1x32xf32>
      %46 = vector.broadcast %45 : vector<1x32xf32> to vector<8x32xf32>
      %47 = arith.addf %44, %46 : vector<8x32xf32>
      %c0_48 = arith.constant 0 : index
      %c0_49 = arith.constant 0 : index
      %c0_50 = arith.constant 0 : index
      %48 = vector.load %arg8[%c0_48, %c0_49, %c0_50] : memref<1x8x32xf32, #tpu.memory_space<vmem>>, vector<1x8x32xf32>
      %49 = vector.shape_cast %48 : vector<1x8x32xf32> to vector<8x32xf32>
      %50 = vector.shape_cast %47 : vector<8x32xf32> to vector<1x8x32xf32>
      tpu.vector_store %arg8[%c0_48, %c0_49, %c0_50], %50 {strides = array<i32>} : memref<1x8x32xf32, #tpu.memory_space<vmem>>, vector<1x8x32xf32>,
    } else {
    }
    return
  }
  func.func @transform_0(%arg0: i32, %arg1: i32, %arg2: i32) -> (i32, i32, i32, i32) {
    %c0_i32 = arith.constant 0 : i32
    %c0_i32_0 = arith.constant 0 : i32
    %c0_i32_1 = arith.constant 0 : i32
    return %arg0, %c0_i32, %arg1, %c0_i32_0 : i32, i32, i32, i32
  }
  func.func @transform_1(%arg0: i32, %arg1: i32, %arg2: i32) -> (i32, i32, i32, i32) {
    %c0_i32 = arith.constant 0 : i32
    %c0_i32_0 = arith.constant 0 : i32
    %c0_i32_1 = arith.constant 0 : i32
    return %arg0, %c0_i32, %arg2, %c0_i32_0 : i32, i32, i32, i32
  }
  func.func @transform_2(%arg0: i32, %arg1: i32, %arg2: i32) -> (i32, i32, i32, i32) {
    %c0_i32 = arith.constant 0 : i32
    %c0_i32_0 = arith.constant 0 : i32
    %c0_i32_1 = arith.constant 0 : i32
    return %arg0, %c0_i32, %arg2, %c0_i32_0 : i32, i32, i32, i32
  }
  func.func @transform_3(%arg0: i32, %arg1: i32, %arg2: i32) -> (i32, i32, i32) {
    %c0_i32 = arith.constant 0 : i32
    %c0_i32_0 = arith.constant 0 : i32
    %c0_i32_1 = arith.constant 0 : i32
    %c0_i32_2 = arith.constant 0 : i32
    return %c0_i32, %c0_i32_0, %c0_i32_1 : i32, i32, i32
  }
  func.func @transform_4(%arg0: i32, %arg1: i32, %arg2: i32) -> (i32, i32) {
    %c0_i32 = arith.constant 0 : i32
    %c0_i32_0 = arith.constant 0 : i32
    %c0_i32_1 = arith.constant 0 : i32
    return %c0_i32, %c0_i32_0 : i32, i32
  }
  func.func @transform_5(%arg0: i32, %arg1: i32, %arg2: i32) -> (i32, i32, i32) {
    %c0_i32 = arith.constant 0 : i32
    %c0_i32_0 = arith.constant 0 : i32
    return %arg0, %arg1, %c0_i32 : i32, i32, i32
  }
}

module attributes {stable_mosaic.version = 11 : i64} {
  func.func @_qkv_projection_kernel(%arg0: i32, %arg1: i32, %arg2: memref<1x8x32xf32, #tpu.memory_space<vmem>>, %arg3: memref<32x96xbf16, #tpu.memory_space<vmem>>, %arg4: memref<1x96xf32, #tpu.memory_space<vmem>>, %arg5: memref<1x4x8x8xbf16, #tpu.memory_space<vmem>>, %arg6: memref<1x4x8x8xbf16, #tpu.memory_space<vmem>>, %arg7: memref<1x4x8x8xbf16, #tpu.memory_space<vmem>>) attributes {dimension_semantics = [#tpu.dimension_semantics<parallel>, #tpu.dimension_semantics<parallel>], iteration_bounds = array<i64: 2, 1>, scalar_prefetch = 0 : i64, scratch_operands = 0 : i64, tpu.core_type = #tpu.core_type<tc>, window_params = [{transform_indices = @transform_0, window_bounds = array<i64: 1, 8, 32>}, {pipeline_mode = #tpu.pipeline_mode<synchronous>, transform_indices = @transform_1, window_bounds = array<i64: 32, 96>}, {pipeline_mode = #tpu.pipeline_mode<synchronous>, transform_indices = @transform_2, window_bounds = array<i64: 1, 96>}, {transform_indices = @transform_3, window_bounds = array<i64: 1, 4, 8, 8>}, {transform_indices = @transform_4, window_bounds = array<i64: 1, 4, 8, 8>}, {transform_indices = @transform_5, window_bounds = array<i64: 1, 4, 8, 8>}]} {
    %c0 = arith.constant 0 : index
    %c0_0 = arith.constant 0 : index
    %c0_1 = arith.constant 0 : index
    %0 = vector.load %arg2[%c0, %c0_0, %c0_1] : memref<1x8x32xf32, #tpu.memory_space<vmem>>, vector<1x8x32xf32>
    %1 = vector.shape_cast %0 : vector<1x8x32xf32> to vector<8x32xf32>
    %2 = arith.truncf %1 : vector<8x32xf32> to vector<8x32xbf16>
    %c0_2 = arith.constant 0 : index
    %c0_3 = arith.constant 0 : index
    %3 = vector.load %arg3[%c0_2, %c0_3] : memref<32x96xbf16, #tpu.memory_space<vmem>>, vector<32x96xbf16>
    %cst = arith.constant dense<0.000000e+00> : vector<8x96xf32>
    %4 = tpu.matmul %2, %3, %cst {dimension_numbers = #tpu.dot_dimension_numbers<[1], [0], [0], [1], [0, 0, 1, 1], [], []>} : vector<8x32xbf16>, vector<32x96xbf16>, vector<8x96xf32> -> vector<8x96xf32>
    %c0_4 = arith.constant 0 : index
    %c0_5 = arith.constant 0 : index
    %5 = vector.load %arg4[%c0_4, %c0_5] : memref<1x96xf32, #tpu.memory_space<vmem>>, vector<1x96xf32>
    %6 = vector.broadcast %5 : vector<1x96xf32> to vector<8x96xf32>
    %7 = arith.addf %4, %6 : vector<8x96xf32>
    %8 = vector.extract_strided_slice %7 {offsets = [0, 0], sizes = [8, 8], strides = [1, 1]} : vector<8x96xf32> to vector<8x8xf32>
    %9 = arith.truncf %8 : vector<8x8xf32> to vector<8x8xbf16>
    %c0_6 = arith.constant 0 : index
    %c0_7 = arith.constant 0 : index
    %c0_8 = arith.constant 0 : index
    %c0_9 = arith.constant 0 : index
    %10 = vector.load %arg5[%c0_6, %c0_7, %c0_8, %c0_9] : memref<1x4x8x8xbf16, #tpu.memory_space<vmem>>, vector<1x1x8x8xbf16>
    %11 = vector.shape_cast %10 : vector<1x1x8x8xbf16> to vector<8x8xbf16>
    %12 = vector.shape_cast %9 : vector<8x8xbf16> to vector<1x1x8x8xbf16>
    tpu.vector_store %arg5[%c0_6, %c0_7, %c0_8, %c0_9], %12 {strides = array<i32>} : memref<1x4x8x8xbf16, #tpu.memory_space<vmem>>, vector<1x1x8x8xbf16>,
    %13 = vector.extract_strided_slice %7 {offsets = [0, 32], sizes = [8, 8], strides = [1, 1]} : vector<8x96xf32> to vector<8x8xf32>
    %14 = arith.truncf %13 : vector<8x8xf32> to vector<8x8xbf16>
    %c0_10 = arith.constant 0 : index
    %c0_11 = arith.constant 0 : index
    %c0_12 = arith.constant 0 : index
    %c0_13 = arith.constant 0 : index
    %15 = vector.load %arg6[%c0_10, %c0_11, %c0_12, %c0_13] : memref<1x4x8x8xbf16, #tpu.memory_space<vmem>>, vector<1x1x8x8xbf16>
    %16 = vector.shape_cast %15 : vector<1x1x8x8xbf16> to vector<8x8xbf16>
    %17 = vector.shape_cast %14 : vector<8x8xbf16> to vector<1x1x8x8xbf16>
    tpu.vector_store %arg6[%c0_10, %c0_11, %c0_12, %c0_13], %17 {strides = array<i32>} : memref<1x4x8x8xbf16, #tpu.memory_space<vmem>>, vector<1x1x8x8xbf16>,
    %18 = vector.extract_strided_slice %7 {offsets = [0, 64], sizes = [8, 8], strides = [1, 1]} : vector<8x96xf32> to vector<8x8xf32>
    %19 = arith.truncf %18 : vector<8x8xf32> to vector<8x8xbf16>
    %c0_14 = arith.constant 0 : index
    %c0_15 = arith.constant 0 : index
    %c0_16 = arith.constant 0 : index
    %c0_17 = arith.constant 0 : index
    %20 = vector.load %arg7[%c0_14, %c0_15, %c0_16, %c0_17] : memref<1x4x8x8xbf16, #tpu.memory_space<vmem>>, vector<1x1x8x8xbf16>
    %21 = vector.shape_cast %20 : vector<1x1x8x8xbf16> to vector<8x8xbf16>
    %22 = vector.shape_cast %19 : vector<8x8xbf16> to vector<1x1x8x8xbf16>
    tpu.vector_store %arg7[%c0_14, %c0_15, %c0_16, %c0_17], %22 {strides = array<i32>} : memref<1x4x8x8xbf16, #tpu.memory_space<vmem>>, vector<1x1x8x8xbf16>,
    %23 = vector.extract_strided_slice %7 {offsets = [0, 8], sizes = [8, 8], strides = [1, 1]} : vector<8x96xf32> to vector<8x8xf32>
    %24 = arith.truncf %23 : vector<8x8xf32> to vector<8x8xbf16>
    %c0_18 = arith.constant 0 : index
    %c1 = arith.constant 1 : index
    %c0_19 = arith.constant 0 : index
    %c0_20 = arith.constant 0 : index
    %25 = vector.load %arg5[%c0_18, %c1, %c0_19, %c0_20] : memref<1x4x8x8xbf16, #tpu.memory_space<vmem>>, vector<1x1x8x8xbf16>
    %26 = vector.shape_cast %25 : vector<1x1x8x8xbf16> to vector<8x8xbf16>
    %27 = vector.shape_cast %24 : vector<8x8xbf16> to vector<1x1x8x8xbf16>
    tpu.vector_store %arg5[%c0_18, %c1, %c0_19, %c0_20], %27 {strides = array<i32>} : memref<1x4x8x8xbf16, #tpu.memory_space<vmem>>, vector<1x1x8x8xbf16>,
    %28 = vector.extract_strided_slice %7 {offsets = [0, 40], sizes = [8, 8], strides = [1, 1]} : vector<8x96xf32> to vector<8x8xf32>
    %29 = arith.truncf %28 : vector<8x8xf32> to vector<8x8xbf16>
    %c0_21 = arith.constant 0 : index
    %c1_22 = arith.constant 1 : index
    %c0_23 = arith.constant 0 : index
    %c0_24 = arith.constant 0 : index
    %30 = vector.load %arg6[%c0_21, %c1_22, %c0_23, %c0_24] : memref<1x4x8x8xbf16, #tpu.memory_space<vmem>>, vector<1x1x8x8xbf16>
    %31 = vector.shape_cast %30 : vector<1x1x8x8xbf16> to vector<8x8xbf16>
    %32 = vector.shape_cast %29 : vector<8x8xbf16> to vector<1x1x8x8xbf16>
    tpu.vector_store %arg6[%c0_21, %c1_22, %c0_23, %c0_24], %32 {strides = array<i32>} : memref<1x4x8x8xbf16, #tpu.memory_space<vmem>>, vector<1x1x8x8xbf16>,
    %33 = vector.extract_strided_slice %7 {offsets = [0, 72], sizes = [8, 8], strides = [1, 1]} : vector<8x96xf32> to vector<8x8xf32>
    %34 = arith.truncf %33 : vector<8x8xf32> to vector<8x8xbf16>
    %c0_25 = arith.constant 0 : index
    %c1_26 = arith.constant 1 : index
    %c0_27 = arith.constant 0 : index
    %c0_28 = arith.constant 0 : index
    %35 = vector.load %arg7[%c0_25, %c1_26, %c0_27, %c0_28] : memref<1x4x8x8xbf16, #tpu.memory_space<vmem>>, vector<1x1x8x8xbf16>
    %36 = vector.shape_cast %35 : vector<1x1x8x8xbf16> to vector<8x8xbf16>
    %37 = vector.shape_cast %34 : vector<8x8xbf16> to vector<1x1x8x8xbf16>
    tpu.vector_store %arg7[%c0_25, %c1_26, %c0_27, %c0_28], %37 {strides = array<i32>} : memref<1x4x8x8xbf16, #tpu.memory_space<vmem>>, vector<1x1x8x8xbf16>,
    %38 = vector.extract_strided_slice %7 {offsets = [0, 16], sizes = [8, 8], strides = [1, 1]} : vector<8x96xf32> to vector<8x8xf32>
    %39 = arith.truncf %38 : vector<8x8xf32> to vector<8x8xbf16>
    %c0_29 = arith.constant 0 : index
    %c2 = arith.constant 2 : index
    %c0_30 = arith.constant 0 : index
    %c0_31 = arith.constant 0 : index
    %40 = vector.load %arg5[%c0_29, %c2, %c0_30, %c0_31] : memref<1x4x8x8xbf16, #tpu.memory_space<vmem>>, vector<1x1x8x8xbf16>
    %41 = vector.shape_cast %40 : vector<1x1x8x8xbf16> to vector<8x8xbf16>
    %42 = vector.shape_cast %39 : vector<8x8xbf16> to vector<1x1x8x8xbf16>
    tpu.vector_store %arg5[%c0_29, %c2, %c0_30, %c0_31], %42 {strides = array<i32>} : memref<1x4x8x8xbf16, #tpu.memory_space<vmem>>, vector<1x1x8x8xbf16>,
    %43 = vector.extract_strided_slice %7 {offsets = [0, 48], sizes = [8, 8], strides = [1, 1]} : vector<8x96xf32> to vector<8x8xf32>
    %44 = arith.truncf %43 : vector<8x8xf32> to vector<8x8xbf16>
    %c0_32 = arith.constant 0 : index
    %c2_33 = arith.constant 2 : index
    %c0_34 = arith.constant 0 : index
    %c0_35 = arith.constant 0 : index
    %45 = vector.load %arg6[%c0_32, %c2_33, %c0_34, %c0_35] : memref<1x4x8x8xbf16, #tpu.memory_space<vmem>>, vector<1x1x8x8xbf16>
    %46 = vector.shape_cast %45 : vector<1x1x8x8xbf16> to vector<8x8xbf16>
    %47 = vector.shape_cast %44 : vector<8x8xbf16> to vector<1x1x8x8xbf16>
    tpu.vector_store %arg6[%c0_32, %c2_33, %c0_34, %c0_35], %47 {strides = array<i32>} : memref<1x4x8x8xbf16, #tpu.memory_space<vmem>>, vector<1x1x8x8xbf16>,
    %48 = vector.extract_strided_slice %7 {offsets = [0, 80], sizes = [8, 8], strides = [1, 1]} : vector<8x96xf32> to vector<8x8xf32>
    %49 = arith.truncf %48 : vector<8x8xf32> to vector<8x8xbf16>
    %c0_36 = arith.constant 0 : index
    %c2_37 = arith.constant 2 : index
    %c0_38 = arith.constant 0 : index
    %c0_39 = arith.constant 0 : index
    %50 = vector.load %arg7[%c0_36, %c2_37, %c0_38, %c0_39] : memref<1x4x8x8xbf16, #tpu.memory_space<vmem>>, vector<1x1x8x8xbf16>
    %51 = vector.shape_cast %50 : vector<1x1x8x8xbf16> to vector<8x8xbf16>
    %52 = vector.shape_cast %49 : vector<8x8xbf16> to vector<1x1x8x8xbf16>
    tpu.vector_store %arg7[%c0_36, %c2_37, %c0_38, %c0_39], %52 {strides = array<i32>} : memref<1x4x8x8xbf16, #tpu.memory_space<vmem>>, vector<1x1x8x8xbf16>,
    %53 = vector.extract_strided_slice %7 {offsets = [0, 24], sizes = [8, 8], strides = [1, 1]} : vector<8x96xf32> to vector<8x8xf32>
    %54 = arith.truncf %53 : vector<8x8xf32> to vector<8x8xbf16>
    %c0_40 = arith.constant 0 : index
    %c3 = arith.constant 3 : index
    %c0_41 = arith.constant 0 : index
    %c0_42 = arith.constant 0 : index
    %55 = vector.load %arg5[%c0_40, %c3, %c0_41, %c0_42] : memref<1x4x8x8xbf16, #tpu.memory_space<vmem>>, vector<1x1x8x8xbf16>
    %56 = vector.shape_cast %55 : vector<1x1x8x8xbf16> to vector<8x8xbf16>
    %57 = vector.shape_cast %54 : vector<8x8xbf16> to vector<1x1x8x8xbf16>
    tpu.vector_store %arg5[%c0_40, %c3, %c0_41, %c0_42], %57 {strides = array<i32>} : memref<1x4x8x8xbf16, #tpu.memory_space<vmem>>, vector<1x1x8x8xbf16>,
    %58 = vector.extract_strided_slice %7 {offsets = [0, 56], sizes = [8, 8], strides = [1, 1]} : vector<8x96xf32> to vector<8x8xf32>
    %59 = arith.truncf %58 : vector<8x8xf32> to vector<8x8xbf16>
    %c0_43 = arith.constant 0 : index
    %c3_44 = arith.constant 3 : index
    %c0_45 = arith.constant 0 : index
    %c0_46 = arith.constant 0 : index
    %60 = vector.load %arg6[%c0_43, %c3_44, %c0_45, %c0_46] : memref<1x4x8x8xbf16, #tpu.memory_space<vmem>>, vector<1x1x8x8xbf16>
    %61 = vector.shape_cast %60 : vector<1x1x8x8xbf16> to vector<8x8xbf16>
    %62 = vector.shape_cast %59 : vector<8x8xbf16> to vector<1x1x8x8xbf16>
    tpu.vector_store %arg6[%c0_43, %c3_44, %c0_45, %c0_46], %62 {strides = array<i32>} : memref<1x4x8x8xbf16, #tpu.memory_space<vmem>>, vector<1x1x8x8xbf16>,
    %63 = vector.extract_strided_slice %7 {offsets = [0, 88], sizes = [8, 8], strides = [1, 1]} : vector<8x96xf32> to vector<8x8xf32>
    %64 = arith.truncf %63 : vector<8x8xf32> to vector<8x8xbf16>
    %c0_47 = arith.constant 0 : index
    %c3_48 = arith.constant 3 : index
    %c0_49 = arith.constant 0 : index
    %c0_50 = arith.constant 0 : index
    %65 = vector.load %arg7[%c0_47, %c3_48, %c0_49, %c0_50] : memref<1x4x8x8xbf16, #tpu.memory_space<vmem>>, vector<1x1x8x8xbf16>
    %66 = vector.shape_cast %65 : vector<1x1x8x8xbf16> to vector<8x8xbf16>
    %67 = vector.shape_cast %64 : vector<8x8xbf16> to vector<1x1x8x8xbf16>
    tpu.vector_store %arg7[%c0_47, %c3_48, %c0_49, %c0_50], %67 {strides = array<i32>} : memref<1x4x8x8xbf16, #tpu.memory_space<vmem>>, vector<1x1x8x8xbf16>,
    return
  }
  func.func @transform_0(%arg0: i32, %arg1: i32) -> (i32, i32, i32) {
    %c0_i32 = arith.constant 0 : i32
    %c0_i32_0 = arith.constant 0 : i32
    return %arg0, %arg1, %c0_i32 : i32, i32, i32
  }
  func.func @transform_1(%arg0: i32, %arg1: i32) -> (i32, i32) {
    %c0_i32 = arith.constant 0 : i32
    %c0_i32_0 = arith.constant 0 : i32
    %c0_i32_1 = arith.constant 0 : i32
    return %c0_i32, %c0_i32_0 : i32, i32
  }
  func.func @transform_2(%arg0: i32, %arg1: i32) -> (i32, i32) {
    %c0_i32 = arith.constant 0 : i32
    %c0_i32_0 = arith.constant 0 : i32
    %c0_i32_1 = arith.constant 0 : i32
    return %c0_i32, %c0_i32_0 : i32, i32
  }
  func.func @transform_3(%arg0: i32, %arg1: i32) -> (i32, i32, i32, i32) {
    %c0_i32 = arith.constant 0 : i32
    %c0_i32_0 = arith.constant 0 : i32
    %c0_i32_1 = arith.constant 0 : i32
    return %arg0, %c0_i32, %arg1, %c0_i32_0 : i32, i32, i32, i32
  }
  func.func @transform_4(%arg0: i32, %arg1: i32) -> (i32, i32, i32, i32) {
    %c0_i32 = arith.constant 0 : i32
    %c0_i32_0 = arith.constant 0 : i32
    %c0_i32_1 = arith.constant 0 : i32
    return %arg0, %c0_i32, %arg1, %c0_i32_0 : i32, i32, i32, i32
  }
  func.func @transform_5(%arg0: i32, %arg1: i32) -> (i32, i32, i32, i32) {
    %c0_i32 = arith.constant 0 : i32
    %c0_i32_0 = arith.constant 0 : i32
    %c0_i32_1 = arith.constant 0 : i32
    return %arg0, %c0_i32, %arg1, %c0_i32_0 : i32, i32, i32, i32
  }
}

</mosaic_0001>

<llo_original>
// kernel: attention_forward.2
$region0: #{attention_forward.2}
  #allocation0 [shape = 'u32[]', space=smem, size = 0x4, offset = 0x4, fixed_abs, tag = 'smem constant byte address 0x4 - core index']
  #allocation1 [shape = 'u32[72,128]{1,0:T(1,128)}', space=vmem, size = 0x9000, scoped, tag = 'internal scratch']
  %s0 = inlined_call_operand.hbm [shape: f32[2,8,32], index: 0, kind: input, shape index: {}]
  %s1 = inlined_call_operand.hbm [shape: bf16[32,96], index: 1, kind: input, shape index: {}]
  %s2 = inlined_call_operand.hbm [shape: f32[1,96], index: 2, kind: input, shape index: {}]
  %s3 = inlined_call_operand.vmem [shape: bf16[2,4,8,8], index: 3, kind: output, shape index: {0}]
  %s4 = inlined_call_operand.vmem [shape: bf16[2,4,8,8], index: 4, kind: output, shape index: {1}]
  %s5 = inlined_call_operand.vmem [shape: bf16[2,4,8,8], index: 5, kind: output, shape index: {2}]
  %6 = xla_tuple %s3, %s4, %s5
  %s7 = sld [smem:[#allocation0]]
  $region73: #{attention_forward.2} parent=0
    _
  %s9 = ssub.s32 1, %s7
  %s10 = scalar_select 0, %s9, %s7
  $region1: #{attention_forward.2} parent=0
    #allocation2 [shape = 'u8[8192]{0}', space=vmem, size = 0x2000, scoped, tag = 'input window, operand 0']
    #allocation3 [shape = 's32[2]{0}', space=sflag, size = 0x8, scoped, tag = 'scoped memory for attention_forward.2']
    #allocation4 [shape = 'u8[8192]{0}', space=vmem, size = 0x2000, scoped, tag = 'input window, operand 1, single buffered']
    #allocation5 [shape = 's32[1]{0}', space=sflag, size = 0x4, scoped, tag = 'scoped memory for attention_forward.2']
    #allocation6 [shape = 'u8[512]{0}', space=vmem, size = 0x400, scoped, tag = 'input window, operand 2, single buffered']
    %11 = vsyncpa [#allocation3], 0
    %s12 = scalar_lea.sflag [#allocation3], 1
    %13 = vsyncpa %s12, 0
    %14 = vsyncpa [#allocation5], 0
    loop: start=0, step=1, limit=4
    $region2: #{attention_forward.2} parent=1 // loop_pre_header
      _
    $region3: #{attention_forward.2} parent=1 // loop_header
      %s16 = sphi 0, %s20
      %p17 = scmp.ge.s32.totalorder %s16, 4
      %s23 = sphi 0, %s35
      %s24 = sphi 0, %s31
      %s25 = sphi 0, %s23
      %s26 = sphi 0, %s24
      %s27 = sphi 0, %s25
      %s28 = sphi 0, %s26
      %s40 = sphi 0, %s42
      %s43 = sphi 0, %s40
      %s44 = sphi 0, %s43
      %s60 = sphi 0, %s44
      %s64 = sphi 0, %s64
      %s66 = sphi 0, %s64
      %s67 = sphi 0, %s66
      %s81 = sphi 0, %s67
      %s85 = sphi 0, %s85
      %s87 = sphi 0, %s85
      %s88 = sphi 0, %s87
      %s102 = sphi 0, %s88
      %s110 = sphi 0, %s112
      %s113 = sphi 0, %s110
      %s114 = sphi 0, %s113
      %s130 = sphi 0, %s114
      %s138 = sphi 0, %s140
      %s141 = sphi 0, %s138
      %s142 = sphi 0, %s141
      %s158 = sphi 0, %s142
      %s166 = sphi 0, %s168
      %s169 = sphi 0, %s166
      %s170 = sphi 0, %s169
      %s186 = sphi 0, %s170
    $region4: #{attention_forward.2} parent=1 // loop_header_branch
      %19 = sbr.rel (%p17) target = $region8
    $region5: #{attention_forward.2} parent=1 // loop_body
      %s21 = ssub.s32 %s16, 1
      %s22 = ssub.s32 %s16, 2
      %s29 = sadd.s32 1, %s24
      %p30 = scmp.ge.s32.totalorder %s29, 1
      %s31 = scalar_select %p30, 0, %s29
      %s32 = sadd.s32 1, %s23
      %s33 = scalar_select %p30, %s32, %s23
      %p34 = scmp.ge.s32.totalorder %s33, 2
      %s35 = scalar_select %p34, 0, %s33
      %s36 = ssub.s32 %s23, %s35
      %s37 = ssub.s32 %s24, %s31
      %s38 = sor.u32 %s36, %s37
      %p39 = scmp.eq.s32.totalorder %s38, 0
      %s41 = sadd.s32 %s40, 1
      %s42 = scalar_select %p39, %s40, %s41
      %p45 = pneg %p39
      %p46 = scmp.eq.s32.totalorder %s16, 1
      %p47 = por %p45, %p46
      %p48 = scmp.ne.s32.totalorder %s40, %s43
      %p49 = scmp.eq.s32.totalorder %s16, 0
      %p50 = por %p48, %p49
      %p51 = scmp.ne.s32.totalorder %s40, %s43
      %p52 = scmp.eq.s32.totalorder %s21, 1
      %p53 = por %p51, %p52
      %p54 = scmp.ne.s32.totalorder %s43, %s44
      %p55 = scmp.eq.s32.totalorder %s21, 0
      %p56 = por %p54, %p55
      %p57 = scmp.ne.s32.totalorder %s43, %s44
      %p58 = scmp.eq.s32.totalorder %s22, 1
      %p59 = por %p57, %p58
      %p61 = scmp.ne.s32.totalorder %s44, %s60
      %p62 = scmp.eq.s32.totalorder %s22, 0
      %p63 = por %p61, %p62
      %s65 = sadd.s32 %s64, 1
      %p68 = scmp.eq.s32.totalorder %s16, 1
      %p69 = scmp.ne.s32.totalorder %s64, %s66
      %p70 = scmp.eq.s32.totalorder %s16, 0
      %p71 = por %p69, %p70
      %p72 = scmp.ne.s32.totalorder %s64, %s66
      %p73 = scmp.eq.s32.totalorder %s21, 1
      %p74 = por %p72, %p73
      %p75 = scmp.ne.s32.totalorder %s66, %s67
      %p76 = scmp.eq.s32.totalorder %s21, 0
      %p77 = por %p75, %p76
      %p78 = scmp.ne.s32.totalorder %s66, %s67
      %p79 = scmp.eq.s32.totalorder %s22, 1
      %p80 = por %p78, %p79
      %p82 = scmp.ne.s32.totalorder %s67, %s81
      %p83 = scmp.eq.s32.totalorder %s22, 0
      %p84 = por %p82, %p83
      %s86 = sadd.s32 %s85, 1
      %p89 = scmp.eq.s32.totalorder %s16, 1
      %p90 = scmp.ne.s32.totalorder %s85, %s87
      %p91 = scmp.eq.s32.totalorder %s16, 0
      %p92 = por %p90, %p91
      %p93 = scmp.ne.s32.totalorder %s85, %s87
      %p94 = scmp.eq.s32.totalorder %s21, 1
      %p95 = por %p93, %p94
      %p96 = scmp.ne.s32.totalorder %s87, %s88
      %p97 = scmp.eq.s32.totalorder %s21, 0
      %p98 = por %p96, %p97
      %p99 = scmp.ne.s32.totalorder %s87, %s88
      %p100 = scmp.eq.s32.totalorder %s22, 1
      %p101 = por %p99, %p100
      %p103 = scmp.ne.s32.totalorder %s88, %s102
      %p104 = scmp.eq.s32.totalorder %s22, 0
      %p105 = por %p103, %p104
      %s106 = ssub.s32 %s23, %s35
      %s107 = ssub.s32 %s24, %s31
      %s108 = sor.u32 %s106, %s107
      %p109 = scmp.eq.s32.totalorder %s108, 0
      %s111 = sadd.s32 %s110, 1
      %s112 = scalar_select %p109, %s110, %s111
      %p115 = pneg %p109
      %p116 = scmp.eq.s32.totalorder %s16, 1
      %p117 = por %p115, %p116
      %p118 = scmp.ne.s32.totalorder %s110, %s113
      %p119 = scmp.eq.s32.totalorder %s16, 0
      %p120 = por %p118, %p119
      %p121 = scmp.ne.s32.totalorder %s110, %s113
      %p122 = scmp.eq.s32.totalorder %s21, 1
      %p123 = por %p121, %p122
      %p124 = scmp.ne.s32.totalorder %s113, %s114
      %p125 = scmp.eq.s32.totalorder %s21, 0
      %p126 = por %p124, %p125
      %p127 = scmp.ne.s32.totalorder %s113, %s114
      %p128 = scmp.eq.s32.totalorder %s22, 1
      %p129 = por %p127, %p128
      %p131 = scmp.ne.s32.totalorder %s114, %s130
      %p132 = scmp.eq.s32.totalorder %s22, 0
      %p133 = por %p131, %p132
      %s134 = ssub.s32 %s23, %s35
      %s135 = ssub.s32 %s24, %s31
      %s136 = sor.u32 %s134, %s135
      %p137 = scmp.eq.s32.totalorder %s136, 0
      %s139 = sadd.s32 %s138, 1
      %s140 = scalar_select %p137, %s138, %s139
      %p143 = pneg %p137
      %p144 = scmp.eq.s32.totalorder %s16, 1
      %p145 = por %p143, %p144
      %p146 = scmp.ne.s32.totalorder %s138, %s141
      %p147 = scmp.eq.s32.totalorder %s16, 0
      %p148 = por %p146, %p147
      %p149 = scmp.ne.s32.totalorder %s138, %s141
      %p150 = scmp.eq.s32.totalorder %s21, 1
      %p151 = por %p149, %p150
      %p152 = scmp.ne.s32.totalorder %s141, %s142
      %p153 = scmp.eq.s32.totalorder %s21, 0
      %p154 = por %p152, %p153
      %p155 = scmp.ne.s32.totalorder %s141, %s142
      %p156 = scmp.eq.s32.totalorder %s22, 1
      %p157 = por %p155, %p156
      %p159 = scmp.ne.s32.totalorder %s142, %s158
      %p160 = scmp.eq.s32.totalorder %s22, 0
      %p161 = por %p159, %p160
      %s162 = ssub.s32 %s23, %s35
      %s163 = ssub.s32 %s24, %s31
      %s164 = sor.u32 %s162, %s163
      %p165 = scmp.eq.s32.totalorder %s164, 0
      %s167 = sadd.s32 %s166, 1
      %s168 = scalar_select %p165, %s166, %s167
      %p171 = pneg %p165
      %p172 = scmp.eq.s32.totalorder %s16, 1
      %p173 = por %p171, %p172
      %p174 = scmp.ne.s32.totalorder %s166, %s169
      %p175 = scmp.eq.s32.totalorder %s16, 0
      %p176 = por %p174, %p175
      %p177 = scmp.ne.s32.totalorder %s166, %s169
      %p178 = scmp.eq.s32.totalorder %s21, 1
      %p179 = por %p177, %p178
      %p180 = scmp.ne.s32.totalorder %s169, %s170
      %p181 = scmp.eq.s32.totalorder %s21, 0
      %p182 = por %p180, %p181
      %p183 = scmp.ne.s32.totalorder %s169, %s170
      %p184 = scmp.eq.s32.totalorder %s22, 1
      %p185 = por %p183, %p184
      %p187 = scmp.ne.s32.totalorder %s170, %s186
      %p188 = scmp.eq.s32.totalorder %s22, 0
      %p189 = por %p187, %p188
      %p190 = scmp.le.s32.totalorder 1, %s16
      %p191 = scmp.lt.s32.totalorder %s16, 3
      %p192 = pnand %p190, %p191
      %p193 = pneg %p192
      // Predicated region
      $region9: #{attention_forward.2} parent=5 // pred_check
        _
      $region10: #{attention_forward.2} parent=5 // pred_check_branch
        %195 = sbr.rel (%p192) target = $region12
      $region11: #{attention_forward.2} parent=5 // pred_region
        %s196 = ssub.s32 %s16, 1
        // Predicated region
        $region13: #{attention_forward.2} parent=11 // pred_check
          %p197 = pneg %p77
        $region14: #{attention_forward.2} parent=11 // pred_check_branch
          %199 = sbr.rel (%p197) target = $region16
        $region15: #{attention_forward.2} parent=11 // pred_region
          %201 = vsyncadd [#allocation5], 0
          %s202 = sshll.u32 %s1, 4
          %s203 = int_to_ptr.hbm [resolvable:$true] %s202
          %s204 = sshll.u32 [#allocation4], 4
          %s205 = int_to_ptr.vmem [resolvable:$true] %s204
          %210 = dma.hbm_to_vmem [thread:$0]  %s203, 256, %s205, [#allocation5], 64, 64, 4
        $region16: #{attention_forward.2} parent=11 // pred_fallthru
          _
        // Predicated region
        $region17: #{attention_forward.2} parent=11 // pred_check
          %p211 = pneg %p98
        $region18: #{attention_forward.2} parent=11 // pred_check_branch
          %213 = sbr.rel (%p211) target = $region20
        $region19: #{attention_forward.2} parent=11 // pred_region
          %215 = vsyncadd [#allocation5], 0
          %s217 = sshll.u32 %s2, 4
          %s218 = int_to_ptr.hbm [resolvable:$true] %s217
          %s219 = sshll.u32 [#allocation6], 4
          %s220 = int_to_ptr.vmem [resolvable:$true] %s219
          %222 = dma.hbm_to_vmem [thread:$0]  %s218, 16, %s220, [#allocation5]
        $region20: #{attention_forward.2} parent=11 // pred_fallthru
          _
      $region12: #{attention_forward.2} parent=5 // pred_fallthru
        _
      %p223 = scmp.lt.s32.totalorder %s16, 2
      // Predicated region
      $region21: #{attention_forward.2} parent=5 // pred_check
        %p224 = pneg %p223
      $region22: #{attention_forward.2} parent=5 // pred_check_branch
        %226 = sbr.rel (%p224) target = $region24
      $region23: #{attention_forward.2} parent=5 // pred_region
        // Predicated region
        $region25: #{attention_forward.2} parent=23 // pred_check
          %p227 = pneg %p50
        $region26: #{attention_forward.2} parent=23 // pred_check_branch
          %229 = sbr.rel (%p227) target = $region28
        $region27: #{attention_forward.2} parent=23 // pred_region
          %s230 = sand.u32 %s40, 1
          %s231 = scalar_lea.sflag [#allocation3], %s230
          %s232 = sand.u32 %s40, 1
          %s233 = smul.addr %s232, 8
          %s234 = scalar_lea.vmem [#allocation2], %s233
          %236 = vsyncadd %s231, 0
          %s237 = sadd.s32 %s24, %s23
          %s238 = smul.addr %s237, 8
          %s239 = scalar_lea.hbm %s0, %s238
          %s241 = sshll.u32 %s239, 4
          %s242 = int_to_ptr.hbm [resolvable:$true] %s241
          %s243 = sshll.u32 %s234, 4
          %s244 = int_to_ptr.vmem [resolvable:$true] %s243
          %246 = dma.hbm_to_vmem [thread:$0]  %s242, 128, %s244, %s231
        $region28: #{attention_forward.2} parent=23 // pred_fallthru
          _
      $region24: #{attention_forward.2} parent=5 // pred_fallthru
        _
      %p247 = scmp.le.s32.totalorder 1, %s16
      %p248 = scmp.lt.s32.totalorder %s16, 3
      %p249 = pnand %p247, %p248
      %p250 = pneg %p249
      // Predicated region
      $region29: #{attention_forward.2} parent=5 // pred_check
        _
      $region30: #{attention_forward.2} parent=5 // pred_check_branch
        %252 = sbr.rel (%p249) target = $region32
      $region31: #{attention_forward.2} parent=5 // pred_region
        %s253 = ssub.s32 %s16, 1
        %s254 = sand.u32 %s43, 1
        %s255 = scalar_lea.sflag [#allocation3], %s254
        %s256 = sand.u32 %s43, 1
        %s257 = smul.addr %s256, 8
        %s258 = scalar_lea.vmem [#allocation2], %s257
        // Predicated region
        $region33: #{attention_forward.2} parent=31 // pred_check
          %p259 = pneg %p56
        $region34: #{attention_forward.2} parent=31 // pred_check_branch
          %261 = sbr.rel (%p259) target = $region36
        $region35: #{attention_forward.2} parent=31 // pred_region
          %263 = dma.done %s255, 128
        $region36: #{attention_forward.2} parent=31 // pred_fallthru
          _
        // Predicated region
        $region37: #{attention_forward.2} parent=31 // pred_check
          %p264 = pneg %p77
        $region38: #{attention_forward.2} parent=31 // pred_check_branch
          %266 = sbr.rel (%p264) target = $region40
        $region39: #{attention_forward.2} parent=31 // pred_region
          %268 = dma.done [#allocation5], 256
        $region40: #{attention_forward.2} parent=31 // pred_fallthru
          _
        // Predicated region
        $region41: #{attention_forward.2} parent=31 // pred_check
          %p269 = pneg %p98
        $region42: #{attention_forward.2} parent=31 // pred_check_branch
          %271 = sbr.rel (%p269) target = $region44
        $region43: #{attention_forward.2} parent=31 // pred_region
          %273 = dma.done [#allocation5], 16
        $region44: #{attention_forward.2} parent=31 // pred_fallthru
          _
        %s274 = sand.u32 %s43, 1
        %s275 = scalar_lea.sflag [#allocation3], %s274
        %s276 = sand.u32 %s43, 1
        %s277 = smul.addr %s276, 8
        %s278 = scalar_lea.vmem [#allocation2], %s277
        %p279 = pneg %p56
        %p280 = pneg %p53
        %p281 = pneg %p77
        %p282 = pneg %p74
        %p283 = pneg %p98
        %p284 = pneg %p95
        %p285 = pneg %p126
        %p286 = pneg %p123
        %p287 = scmp.lt.s32.totalorder %s25, 1
        %s288 = scalar_select %p287, %s25, 1
        %p289 = scmp.lt.s32.totalorder %s26, 0
        %s290 = scalar_select %p289, %s26, 0
        %s291 = smul.addr %s288, 4
        %s292 = sadd.s32 %s290, %s291
        %s293 = smul.addr %s292, 4
        %s294 = scalar_lea.vmem %s3, %s293
        %p295 = pneg %p154
        %p296 = pneg %p151
        %p297 = scmp.lt.s32.totalorder %s25, 1
        %s298 = scalar_select %p297, %s25, 1
        %p299 = scmp.lt.s32.totalorder %s26, 0
        %s300 = scalar_select %p299, %s26, 0
        %s301 = smul.addr %s298, 4
        %s302 = sadd.s32 %s300, %s301
        %s303 = smul.addr %s302, 4
        %s304 = scalar_lea.vmem %s4, %s303
        %p305 = pneg %p182
        %p306 = pneg %p179
        %p307 = scmp.lt.s32.totalorder %s25, 1
        %s308 = scalar_select %p307, %s25, 1
        %p309 = scmp.lt.s32.totalorder %s26, 0
        %s310 = scalar_select %p309, %s26, 0
        %s311 = smul.addr %s308, 4
        %s312 = sadd.s32 %s310, %s311
        %s313 = smul.addr %s312, 4
        %s314 = scalar_lea.vmem %s5, %s313
        %p315 = scmp.lt.s32.totalorder %s25, 1
        %s316 = scalar_select %p315, %s25, 1
        %p317 = scmp.lt.s32.totalorder %s26, 0
        %s318 = scalar_select %p317, %s26, 0
        %s319 = smul.addr %s316, 4
        %s320 = sadd.s32 %s318, %s319
        %s321 = smul.addr %s320, 4
        %s322 = scalar_lea.vmem %s3, %s321
        %p323 = scmp.lt.s32.totalorder %s25, 1
        %s324 = scalar_select %p323, %s25, 1
        %p325 = scmp.lt.s32.totalorder %s26, 0
        %s326 = scalar_select %p325, %s26, 0
        %s327 = smul.addr %s324, 4
        %s328 = sadd.s32 %s326, %s327
        %s329 = smul.addr %s328, 4
        %s330 = scalar_lea.vmem %s4, %s329
        %p331 = scmp.lt.s32.totalorder %s25, 1
        %s332 = scalar_select %p331, %s25, 1
        %p333 = scmp.lt.s32.totalorder %s26, 0
        %s334 = scalar_select %p333, %s26, 0
        %s335 = smul.addr %s332, 4
        %s336 = sadd.s32 %s334, %s335
        %s337 = smul.addr %s336, 4
        %s338 = scalar_lea.vmem %s5, %s337
        %v340 = vld [vmem:[%s258] sm:$0xff]
        %v341 = vpack.c.bf16 %v340, %v340
        %v342 = vld [vmem:[#allocation4] sm:$0xf]
        %v343 = vld [vmem:[#allocation4 + $0x4] sm:$0xf]
        %v344 = vld [vmem:[#allocation4 + $0x8] sm:$0xf]
        %v345 = vld [vmem:[#allocation4 + $0xc] sm:$0xf]
        %v346 = vld [vmem:[#allocation6] sm:$0x1]
        %v348 = vperm.slane %v346, 0
        %v354 = vunpack.c.l.b16 %v342
        %v355 = vunpack.c.l.b16 %v343
        %v356 = vunpack.c.l.b16 %v344
        %v357 = vunpack.c.l.b16 %v345
        %v358 = vpack.c.b16 %v355, %v354
        %v359 = vpack.c.b16 %v357, %v356
        %vm362 = vcmask 261120
        %v364 = vsel %vm362, %v341, 0
        %366 = vmatpush.bf16.msra.mxu0 0
        %367 = vmatpush.bf16.msra.mxu0 0
        %368 = vmatpush.bf16.msra.mxu0 0
        %369 = vmatpush.bf16.msra.mxu0 0
        %370 = vmatpush.bf16.msra.mxu0 0
        %371 = vmatpush.bf16.msra.mxu0 0
        %372 = vmatpush.bf16.msra.mxu0 %v359
        %373 = vmatpush.bf16.msra.mxu0 %v358
        %374 = vmatmul.bf16.gmra.mxu0 %v364
        %v375 = vpop.f32.mrf.mxu0
        %v376 = vadd.f32 %v348, %v375
        %v377 = vpop.f32.mrf.mxu0
        %378 = vdwg.mxu0
        %v379 = vpack.c.bf16 %v376, %v376
        %vm380 = vcmask 60416
        %381 = vst.msk [vmem:[%s322] sm:$0xf] %vm380, %v379
        %383 = vrot.lane.b32.xlu0 %v379, 96
        %v384 = vpop.permute.xlu0 %383
        %386 = vst.msk [vmem:[%s330] sm:$0xf] %vm380, %v384
        %387 = vrot.lane.b32.xlu0 %v379, 64
        %v388 = vpop.permute.xlu0 %387
        %390 = vst.msk [vmem:[%s338] sm:$0xf] %vm380, %v388
        %391 = vrot.lane.b32.xlu0 %v379, 120
        %v392 = vpop.permute.xlu0 %391
        %s394 = scalar_lea.vmem %s322, 4
        %395 = vst.msk [vmem:[%s394] sm:$0xf] %vm380, %v392
        %396 = vrot.lane.b32.xlu0 %v379, 88
        %v397 = vpop.permute.xlu0 %396
        %s399 = scalar_lea.vmem %s330, 4
        %400 = vst.msk [vmem:[%s399] sm:$0xf] %vm380, %v397
        %401 = vrot.lane.b32.xlu0 %v379, 56
        %v402 = vpop.permute.xlu0 %401
        %s404 = scalar_lea.vmem %s338, 4
        %405 = vst.msk [vmem:[%s404] sm:$0xf] %vm380, %v402
        %406 = vrot.lane.b32.xlu0 %v379, 112
        %v407 = vpop.permute.xlu0 %406
        %s409 = scalar_lea.vmem %s322, 8
        %410 = vst.msk [vmem:[%s409] sm:$0xf] %vm380, %v407
        %411 = vrot.lane.b32.xlu0 %v379, 80
        %v412 = vpop.permute.xlu0 %411
        %s414 = scalar_lea.vmem %s330, 8
        %415 = vst.msk [vmem:[%s414] sm:$0xf] %vm380, %v412
        %416 = vrot.lane.b32.xlu0 %v379, 48
        %v417 = vpop.permute.xlu0 %416
        %s419 = scalar_lea.vmem %s338, 8
        %420 = vst.msk [vmem:[%s419] sm:$0xf] %vm380, %v417
        %421 = vrot.lane.b32.xlu0 %v379, 104
        %v422 = vpop.permute.xlu0 %421
        %s424 = scalar_lea.vmem %s322, 12
        %425 = vst.msk [vmem:[%s424] sm:$0xf] %vm380, %v422
        %426 = vrot.lane.b32.xlu0 %v379, 72
        %v427 = vpop.permute.xlu0 %426
        %s429 = scalar_lea.vmem %s330, 12
        %430 = vst.msk [vmem:[%s429] sm:$0xf] %vm380, %v427
        %431 = vrot.lane.b32.xlu0 %v379, 40
        %v432 = vpop.permute.xlu0 %431
        %s434 = scalar_lea.vmem %s338, 12
        %435 = vst.msk [vmem:[%s434] sm:$0xf] %vm380, %v432
        %p436 = scmp.lt.s32.totalorder %s25, 1
        %s437 = scalar_select %p436, %s25, 1
        %p438 = scmp.lt.s32.totalorder %s26, 0
        %s439 = scalar_select %p438, %s26, 0
        %s440 = smul.addr %s437, 4
        %s441 = sadd.s32 %s439, %s440
        %s442 = smul.addr %s441, 4
        %s443 = scalar_lea.vmem %s3, %s442
        %p444 = scmp.lt.s32.totalorder %s25, 1
        %s445 = scalar_select %p444, %s25, 1
        %p446 = scmp.lt.s32.totalorder %s26, 0
        %s447 = scalar_select %p446, %s26, 0
        %s448 = smul.addr %s445, 4
        %s449 = sadd.s32 %s447, %s448
        %s450 = smul.addr %s449, 4
        %s451 = scalar_lea.vmem %s4, %s450
        %p452 = scmp.lt.s32.totalorder %s25, 1
        %s453 = scalar_select %p452, %s25, 1
        %p454 = scmp.lt.s32.totalorder %s26, 0
        %s455 = scalar_select %p454, %s26, 0
        %s456 = smul.addr %s453, 4
        %s457 = sadd.s32 %s455, %s456
        %s458 = smul.addr %s457, 4
        %s459 = scalar_lea.vmem %s5, %s458
        // Predicated region
        $region45: #{attention_forward.2} parent=31 // pred_check
          %p460 = pneg %p123
        $region46: #{attention_forward.2} parent=31 // pred_check_branch
          %462 = sbr.rel (%p460) target = $region48
        $region47: #{attention_forward.2} parent=31 // pred_region
          _
        $region48: #{attention_forward.2} parent=31 // pred_fallthru
          _
        // Predicated region
        $region49: #{attention_forward.2} parent=31 // pred_check
          %p463 = pneg %p151
        $region50: #{attention_forward.2} parent=31 // pred_check_branch
          %465 = sbr.rel (%p463) target = $region52
        $region51: #{attention_forward.2} parent=31 // pred_region
          _
        $region52: #{attention_forward.2} parent=31 // pred_fallthru
          _
        // Predicated region
        $region53: #{attention_forward.2} parent=31 // pred_check
          %p466 = pneg %p179
        $region54: #{attention_forward.2} parent=31 // pred_check_branch
          %468 = sbr.rel (%p466) target = $region56
        $region55: #{attention_forward.2} parent=31 // pred_region
          _
        $region56: #{attention_forward.2} parent=31 // pred_fallthru
          _
      $region32: #{attention_forward.2} parent=5 // pred_fallthru
        _
      %p469 = scmp.le.s32.totalorder 2, %s16
      // Predicated region
      $region57: #{attention_forward.2} parent=5 // pred_check
        %p470 = pneg %p469
      $region58: #{attention_forward.2} parent=5 // pred_check_branch
        %472 = sbr.rel (%p470) target = $region60
      $region59: #{attention_forward.2} parent=5 // pred_region
        %s473 = ssub.s32 %s16, 2
        // Predicated region
        $region61: #{attention_forward.2} parent=59 // pred_check
          %p474 = pneg %p129
        $region62: #{attention_forward.2} parent=59 // pred_check_branch
          %476 = sbr.rel (%p474) target = $region64
        $region63: #{attention_forward.2} parent=59 // pred_region
          %p477 = scmp.lt.s32.totalorder %s27, 1
          %s478 = scalar_select %p477, %s27, 1
          %p479 = scmp.lt.s32.totalorder %s28, 0
          %s480 = scalar_select %p479, %s28, 0
          %s481 = smul.addr %s478, 4
          %s482 = sadd.s32 %s480, %s481
          %s483 = smul.addr %s482, 4
          %s484 = scalar_lea.vmem %s3, %s483
        $region64: #{attention_forward.2} parent=59 // pred_fallthru
          _
        // Predicated region
        $region65: #{attention_forward.2} parent=59 // pred_check
          %p485 = pneg %p157
        $region66: #{attention_forward.2} parent=59 // pred_check_branch
          %487 = sbr.rel (%p485) target = $region68
        $region67: #{attention_forward.2} parent=59 // pred_region
          %p488 = scmp.lt.s32.totalorder %s27, 1
          %s489 = scalar_select %p488, %s27, 1
          %p490 = scmp.lt.s32.totalorder %s28, 0
          %s491 = scalar_select %p490, %s28, 0
          %s492 = smul.addr %s489, 4
          %s493 = sadd.s32 %s491, %s492
          %s494 = smul.addr %s493, 4
          %s495 = scalar_lea.vmem %s4, %s494
        $region68: #{attention_forward.2} parent=59 // pred_fallthru
          _
        // Predicated region
        $region69: #{attention_forward.2} parent=59 // pred_check
          %p496 = pneg %p185
        $region70: #{attention_forward.2} parent=59 // pred_check_branch
          %498 = sbr.rel (%p496) target = $region72
        $region71: #{attention_forward.2} parent=59 // pred_region
          %p499 = scmp.lt.s32.totalorder %s27, 1
          %s500 = scalar_select %p499, %s27, 1
          %p501 = scmp.lt.s32.totalorder %s28, 0
          %s502 = scalar_select %p501, %s28, 0
          %s503 = smul.addr %s500, 4
          %s504 = sadd.s32 %s502, %s503
          %s505 = smul.addr %s504, 4
          %s506 = scalar_lea.vmem %s5, %s505
        $region72: #{attention_forward.2} parent=59 // pred_fallthru
          _
      $region60: #{attention_forward.2} parent=5 // pred_fallthru
        _
    $region6: #{attention_forward.2} parent=1 // loop_footer
      %s20 = sadd.s32 1, %s16
    $region7: #{attention_forward.2} parent=1 // loop_footer_branch
      %15 = sbr.rel target = $region3
    $region8: #{attention_forward.2} parent=1 // loop_exit
      _
    %507 = vsyncpa [#allocation3], 1
    %s508 = scalar_lea.sflag [#allocation3], 1
    %509 = vsyncpa %s508, 1
    %510 = vsyncpa [#allocation5], 1

// kernel: attention_forward.3
$region0: #{attention_forward.3}
  #allocation0 [shape = 'u32[]', space=smem, size = 0x4, offset = 0x4, fixed_abs, tag = 'smem constant byte address 0x4 - core index']
  #allocation1 [shape = 'u32[72,128]{1,0:T(1,128)}', space=vmem, size = 0x9000, scoped, tag = 'internal scratch']
  #allocation2 [shape = 'f32[4,8,1]{2,1,0:T(8,128)}', space=vmem, size = 0x4000, scoped, tag = 'scratch operand']
  #allocation3 [shape = 'f32[4,8,1]{2,1,0:T(8,128)}', space=vmem, size = 0x4000, scoped, tag = 'scratch operand']
  #allocation4 [shape = 'f32[4,8,8]{2,1,0:T(8,128)}', space=vmem, size = 0x4000, scoped, tag = 'scratch operand']
  %s0 = inlined_call_operand.vmem [shape: bf16[2,4,8,8], index: 0, kind: input, shape index: {}]
  %s1 = inlined_call_operand.vmem [shape: bf16[2,4,8,8], index: 1, kind: input, shape index: {}]
  %s2 = inlined_call_operand.vmem [shape: bf16[2,4,8,8], index: 2, kind: input, shape index: {}]
  %s3 = inlined_call_operand.vmem [shape: bf16[4,8,32], index: 3, kind: input, shape index: {}]
  %s4 = inlined_call_operand.vmem [shape: f32[1,32], index: 4, kind: input, shape index: {}]
  %s5 = inlined_call_operand.hbm [shape: f32[2,8,32], index: 5, kind: output, shape index: {}]
  %s6 = sld [smem:[#allocation0]]
  $region61: #{attention_forward.3} parent=0
    _
  %s8 = ssub.s32 1, %s6
  %s9 = scalar_select 0, %s8, %s6
  $region1: #{attention_forward.3} parent=0
    #allocation5 [shape = 'u8[8192]{0}', space=vmem, size = 0x2000, scoped, tag = 'output window, operand 0']
    #allocation6 [shape = 's32[2]{0}', space=sflag, size = 0x8, scoped, tag = 'scoped memory for attention_forward.3']
    %10 = vsyncpa [#allocation6], 0
    %s11 = scalar_lea.sflag [#allocation6], 1
    %12 = vsyncpa %s11, 0
    loop: start=0, step=1, limit=4
    $region2: #{attention_forward.3} parent=1 // loop_pre_header
      _
    $region3: #{attention_forward.3} parent=1 // loop_header
      %s14 = sphi 0, %s18
      %p15 = scmp.ge.s32.totalorder %s14, 4
      %s21 = sphi 0, %s40
      %s22 = sphi 0, %s36
      %s23 = sphi 0, %s32
      %s24 = sphi 0, %s21
      %s25 = sphi 0, %s22
      %s26 = sphi 0, %s23
      %s27 = sphi 0, %s24
      %s28 = sphi 0, %s25
      %s29 = sphi 0, %s26
      %s45 = sphi 0, %s47
      %s48 = sphi 0, %s45
      %s49 = sphi 0, %s48
      %s65 = sphi 0, %s49
      %s73 = sphi 0, %s75
      %s76 = sphi 0, %s73
      %s77 = sphi 0, %s76
      %s93 = sphi 0, %s77
      %s101 = sphi 0, %s103
      %s104 = sphi 0, %s101
      %s105 = sphi 0, %s104
      %s121 = sphi 0, %s105
      %s125 = sphi 0, %s125
      %s127 = sphi 0, %s125
      %s128 = sphi 0, %s127
      %s142 = sphi 0, %s128
      %s146 = sphi 0, %s146
      %s148 = sphi 0, %s146
      %s149 = sphi 0, %s148
      %s163 = sphi 0, %s149
      %s171 = sphi 0, %s173
      %s174 = sphi 0, %s171
      %s175 = sphi 0, %s174
      %s191 = sphi 0, %s175
    $region4: #{attention_forward.3} parent=1 // loop_header_branch
      %17 = sbr.rel (%p15) target = $region8
    $region5: #{attention_forward.3} parent=1 // loop_body
      %s19 = ssub.s32 %s14, 1
      %s20 = ssub.s32 %s14, 2
      %s30 = sadd.s32 1, %s23
      %p31 = scmp.ge.s32.totalorder %s30, 1
      %s32 = scalar_select %p31, 0, %s30
      %s33 = sadd.s32 1, %s22
      %s34 = scalar_select %p31, %s33, %s22
      %p35 = scmp.ge.s32.totalorder %s34, 1
      %s36 = scalar_select %p35, 0, %s34
      %s37 = sadd.s32 1, %s21
      %s38 = scalar_select %p35, %s37, %s21
      %p39 = scmp.ge.s32.totalorder %s38, 2
      %s40 = scalar_select %p39, 0, %s38
      %s41 = ssub.s32 %s21, %s40
      %s42 = ssub.s32 %s22, %s36
      %s43 = sor.u32 %s41, %s42
      %p44 = scmp.eq.s32.totalorder %s43, 0
      %s46 = sadd.s32 %s45, 1
      %s47 = scalar_select %p44, %s45, %s46
      %p50 = pneg %p44
      %p51 = scmp.eq.s32.totalorder %s14, 1
      %p52 = por %p50, %p51
      %p53 = scmp.ne.s32.totalorder %s45, %s48
      %p54 = scmp.eq.s32.totalorder %s14, 0
      %p55 = por %p53, %p54
      %p56 = scmp.ne.s32.totalorder %s45, %s48
      %p57 = scmp.eq.s32.totalorder %s19, 1
      %p58 = por %p56, %p57
      %p59 = scmp.ne.s32.totalorder %s48, %s49
      %p60 = scmp.eq.s32.totalorder %s19, 0
      %p61 = por %p59, %p60
      %p62 = scmp.ne.s32.totalorder %s48, %s49
      %p63 = scmp.eq.s32.totalorder %s20, 1
      %p64 = por %p62, %p63
      %p66 = scmp.ne.s32.totalorder %s49, %s65
      %p67 = scmp.eq.s32.totalorder %s20, 0
      %p68 = por %p66, %p67
      %s69 = ssub.s32 %s21, %s40
      %s70 = ssub.s32 %s23, %s32
      %s71 = sor.u32 %s69, %s70
      %p72 = scmp.eq.s32.totalorder %s71, 0
      %s74 = sadd.s32 %s73, 1
      %s75 = scalar_select %p72, %s73, %s74
      %p78 = pneg %p72
      %p79 = scmp.eq.s32.totalorder %s14, 1
      %p80 = por %p78, %p79
      %p81 = scmp.ne.s32.totalorder %s73, %s76
      %p82 = scmp.eq.s32.totalorder %s14, 0
      %p83 = por %p81, %p82
      %p84 = scmp.ne.s32.totalorder %s73, %s76
      %p85 = scmp.eq.s32.totalorder %s19, 1
      %p86 = por %p84, %p85
      %p87 = scmp.ne.s32.totalorder %s76, %s77
      %p88 = scmp.eq.s32.totalorder %s19, 0
      %p89 = por %p87, %p88
      %p90 = scmp.ne.s32.totalorder %s76, %s77
      %p91 = scmp.eq.s32.totalorder %s20, 1
      %p92 = por %p90, %p91
      %p94 = scmp.ne.s32.totalorder %s77, %s93
      %p95 = scmp.eq.s32.totalorder %s20, 0
      %p96 = por %p94, %p95
      %s97 = ssub.s32 %s21, %s40
      %s98 = ssub.s32 %s23, %s32
      %s99 = sor.u32 %s97, %s98
      %p100 = scmp.eq.s32.totalorder %s99, 0
      %s102 = sadd.s32 %s101, 1
      %s103 = scalar_select %p100, %s101, %s102
      %p106 = pneg %p100
      %p107 = scmp.eq.s32.totalorder %s14, 1
      %p108 = por %p106, %p107
      %p109 = scmp.ne.s32.totalorder %s101, %s104
      %p110 = scmp.eq.s32.totalorder %s14, 0
      %p111 = por %p109, %p110
      %p112 = scmp.ne.s32.totalorder %s101, %s104
      %p113 = scmp.eq.s32.totalorder %s19, 1
      %p114 = por %p112, %p113
      %p115 = scmp.ne.s32.totalorder %s104, %s105
      %p116 = scmp.eq.s32.totalorder %s19, 0
      %p117 = por %p115, %p116
      %p118 = scmp.ne.s32.totalorder %s104, %s105
      %p119 = scmp.eq.s32.totalorder %s20, 1
      %p120 = por %p118, %p119
      %p122 = scmp.ne.s32.totalorder %s105, %s121
      %p123 = scmp.eq.s32.totalorder %s20, 0
      %p124 = por %p122, %p123
      %s126 = sadd.s32 %s125, 1
      %p129 = scmp.eq.s32.totalorder %s14, 1
      %p130 = scmp.ne.s32.totalorder %s125, %s127
      %p131 = scmp.eq.s32.totalorder %s14, 0
      %p132 = por %p130, %p131
      %p133 = scmp.ne.s32.totalorder %s125, %s127
      %p134 = scmp.eq.s32.totalorder %s19, 1
      %p135 = por %p133, %p134
      %p136 = scmp.ne.s32.totalorder %s127, %s128
      %p137 = scmp.eq.s32.totalorder %s19, 0
      %p138 = por %p136, %p137
      %p139 = scmp.ne.s32.totalorder %s127, %s128
      %p140 = scmp.eq.s32.totalorder %s20, 1
      %p141 = por %p139, %p140
      %p143 = scmp.ne.s32.totalorder %s128, %s142
      %p144 = scmp.eq.s32.totalorder %s20, 0
      %p145 = por %p143, %p144
      %s147 = sadd.s32 %s146, 1
      %p150 = scmp.eq.s32.totalorder %s14, 1
      %p151 = scmp.ne.s32.totalorder %s146, %s148
      %p152 = scmp.eq.s32.totalorder %s14, 0
      %p153 = por %p151, %p152
      %p154 = scmp.ne.s32.totalorder %s146, %s148
      %p155 = scmp.eq.s32.totalorder %s19, 1
      %p156 = por %p154, %p155
      %p157 = scmp.ne.s32.totalorder %s148, %s149
      %p158 = scmp.eq.s32.totalorder %s19, 0
      %p159 = por %p157, %p158
      %p160 = scmp.ne.s32.totalorder %s148, %s149
      %p161 = scmp.eq.s32.totalorder %s20, 1
      %p162 = por %p160, %p161
      %p164 = scmp.ne.s32.totalorder %s149, %s163
      %p165 = scmp.eq.s32.totalorder %s20, 0
      %p166 = por %p164, %p165
      %s167 = ssub.s32 %s21, %s40
      %s168 = ssub.s32 %s22, %s36
      %s169 = sor.u32 %s167, %s168
      %p170 = scmp.eq.s32.totalorder %s169, 0
      %s172 = sadd.s32 %s171, 1
      %s173 = scalar_select %p170, %s171, %s172
      %p176 = pneg %p170
      %p177 = scmp.eq.s32.totalorder %s14, 1
      %p178 = por %p176, %p177
      %p179 = scmp.ne.s32.totalorder %s171, %s174
      %p180 = scmp.eq.s32.totalorder %s14, 0
      %p181 = por %p179, %p180
      %p182 = scmp.ne.s32.totalorder %s171, %s174
      %p183 = scmp.eq.s32.totalorder %s19, 1
      %p184 = por %p182, %p183
      %p185 = scmp.ne.s32.totalorder %s174, %s175
      %p186 = scmp.eq.s32.totalorder %s19, 0
      %p187 = por %p185, %p186
      %p188 = scmp.ne.s32.totalorder %s174, %s175
      %p189 = scmp.eq.s32.totalorder %s20, 1
      %p190 = por %p188, %p189
      %p192 = scmp.ne.s32.totalorder %s175, %s191
      %p193 = scmp.eq.s32.totalorder %s20, 0
      %p194 = por %p192, %p193
      %p195 = scmp.le.s32.totalorder 1, %s14
      %p196 = scmp.lt.s32.totalorder %s14, 3
      %p197 = pnand %p195, %p196
      %p198 = pneg %p197
      // Predicated region
      $region9: #{attention_forward.3} parent=5 // pred_check
        _
      $region10: #{attention_forward.3} parent=5 // pred_check_branch
        %200 = sbr.rel (%p197) target = $region12
      $region11: #{attention_forward.3} parent=5 // pred_region
        %s201 = ssub.s32 %s14, 1
        // Predicated region
        $region13: #{attention_forward.3} parent=11 // pred_check
          %p202 = pneg %p138
        $region14: #{attention_forward.3} parent=11 // pred_check_branch
          %204 = sbr.rel (%p202) target = $region16
        $region15: #{attention_forward.3} parent=11 // pred_region
          _
        $region16: #{attention_forward.3} parent=11 // pred_fallthru
          _
        // Predicated region
        $region17: #{attention_forward.3} parent=11 // pred_check
          %p205 = pneg %p159
        $region18: #{attention_forward.3} parent=11 // pred_check_branch
          %207 = sbr.rel (%p205) target = $region20
        $region19: #{attention_forward.3} parent=11 // pred_region
          _
        $region20: #{attention_forward.3} parent=11 // pred_fallthru
          _
      $region12: #{attention_forward.3} parent=5 // pred_fallthru
        _
      %p208 = scmp.lt.s32.totalorder %s14, 2
      // Predicated region
      $region21: #{attention_forward.3} parent=5 // pred_check
        %p209 = pneg %p208
      $region22: #{attention_forward.3} parent=5 // pred_check_branch
        %211 = sbr.rel (%p209) target = $region24
      $region23: #{attention_forward.3} parent=5 // pred_region
        // Predicated region
        $region25: #{attention_forward.3} parent=23 // pred_check
          %p212 = pneg %p55
        $region26: #{attention_forward.3} parent=23 // pred_check_branch
          %214 = sbr.rel (%p212) target = $region28
        $region27: #{attention_forward.3} parent=23 // pred_region
          %p215 = scmp.lt.s32.totalorder %s21, 1
          %s216 = scalar_select %p215, %s21, 1
          %p217 = scmp.lt.s32.totalorder %s22, 0
          %s218 = scalar_select %p217, %s22, 0
          %s219 = smul.addr %s216, 4
          %s220 = sadd.s32 %s218, %s219
          %s221 = smul.addr %s220, 4
          %s222 = scalar_lea.vmem %s0, %s221
        $region28: #{attention_forward.3} parent=23 // pred_fallthru
          _
        // Predicated region
        $region29: #{attention_forward.3} parent=23 // pred_check
          %p223 = pneg %p83
        $region30: #{attention_forward.3} parent=23 // pred_check_branch
          %225 = sbr.rel (%p223) target = $region32
        $region31: #{attention_forward.3} parent=23 // pred_region
          %p226 = scmp.lt.s32.totalorder %s21, 1
          %s227 = scalar_select %p226, %s21, 1
          %p228 = scmp.lt.s32.totalorder %s23, 0
          %s229 = scalar_select %p228, %s23, 0
          %s230 = smul.addr %s227, 4
          %s231 = sadd.s32 %s229, %s230
          %s232 = smul.addr %s231, 4
          %s233 = scalar_lea.vmem %s1, %s232
        $region32: #{attention_forward.3} parent=23 // pred_fallthru
          _
        // Predicated region
        $region33: #{attention_forward.3} parent=23 // pred_check
          %p234 = pneg %p111
        $region34: #{attention_forward.3} parent=23 // pred_check_branch
          %236 = sbr.rel (%p234) target = $region36
        $region35: #{attention_forward.3} parent=23 // pred_region
          %p237 = scmp.lt.s32.totalorder %s21, 1
          %s238 = scalar_select %p237, %s21, 1
          %p239 = scmp.lt.s32.totalorder %s23, 0
          %s240 = scalar_select %p239, %s23, 0
          %s241 = smul.addr %s238, 4
          %s242 = sadd.s32 %s240, %s241
          %s243 = smul.addr %s242, 4
          %s244 = scalar_lea.vmem %s2, %s243
        $region36: #{attention_forward.3} parent=23 // pred_fallthru
          _
      $region24: #{attention_forward.3} parent=5 // pred_fallthru
        _
      %p245 = scmp.le.s32.totalorder 1, %s14
      %p246 = scmp.lt.s32.totalorder %s14, 3
      %p247 = pnand %p245, %p246
      %p248 = pneg %p247
      // Predicated region
      $region37: #{attention_forward.3} parent=5 // pred_check
        _
      $region38: #{attention_forward.3} parent=5 // pred_check_branch
        %250 = sbr.rel (%p247) target = $region40
      $region39: #{attention_forward.3} parent=5 // pred_region
        %s251 = ssub.s32 %s14, 1
        %p252 = scmp.lt.s32.totalorder %s24, 1
        %s253 = scalar_select %p252, %s24, 1
        %p254 = scmp.lt.s32.totalorder %s25, 0
        %s255 = scalar_select %p254, %s25, 0
        %s256 = smul.addr %s253, 4
        %s257 = sadd.s32 %s255, %s256
        %s258 = smul.addr %s257, 4
        %s259 = scalar_lea.vmem %s0, %s258
        %p260 = pneg %p61
        %p261 = pneg %p58
        %p262 = scmp.lt.s32.totalorder %s24, 1
        %s263 = scalar_select %p262, %s24, 1
        %p264 = scmp.lt.s32.totalorder %s26, 0
        %s265 = scalar_select %p264, %s26, 0
        %s266 = smul.addr %s263, 4
        %s267 = sadd.s32 %s265, %s266
        %s268 = smul.addr %s267, 4
        %s269 = scalar_lea.vmem %s1, %s268
        %p270 = pneg %p89
        %p271 = pneg %p86
        %p272 = scmp.lt.s32.totalorder %s24, 1
        %s273 = scalar_select %p272, %s24, 1
        %p274 = scmp.lt.s32.totalorder %s26, 0
        %s275 = scalar_select %p274, %s26, 0
        %s276 = smul.addr %s273, 4
        %s277 = sadd.s32 %s275, %s276
        %s278 = smul.addr %s277, 4
        %s279 = scalar_lea.vmem %s2, %s278
        %p280 = pneg %p117
        %p281 = pneg %p114
        %p282 = pneg %p138
        %p283 = pneg %p135
        %p284 = pneg %p159
        %p285 = pneg %p156
        %p286 = pneg %p187
        %p287 = pneg %p184
        %s288 = sand.u32 %s174, 1
        %s289 = scalar_lea.sflag [#allocation6], %s288
        %s290 = sand.u32 %s174, 1
        %s291 = smul.addr %s290, 8
        %s292 = scalar_lea.vmem [#allocation5], %s291
        %p293 = scmp.lt.s32.totalorder %s24, 1
        %s294 = scalar_select %p293, %s24, 1
        %p295 = scmp.lt.s32.totalorder %s25, 0
        %s296 = scalar_select %p295, %s25, 0
        %s297 = smul.addr %s294, 4
        %s298 = sadd.s32 %s296, %s297
        %s299 = smul.addr %s298, 4
        %s300 = scalar_lea.vmem %s0, %s299
        %p301 = scmp.lt.s32.totalorder %s24, 1
        %s302 = scalar_select %p301, %s24, 1
        %p303 = scmp.lt.s32.totalorder %s26, 0
        %s304 = scalar_select %p303, %s26, 0
        %s305 = smul.addr %s302, 4
        %s306 = sadd.s32 %s304, %s305
        %s307 = smul.addr %s306, 4
        %s308 = scalar_lea.vmem %s1, %s307
        %p309 = scmp.lt.s32.totalorder %s24, 1
        %s310 = scalar_select %p309, %s24, 1
        %p311 = scmp.lt.s32.totalorder %s26, 0
        %s312 = scalar_select %p311, %s26, 0
        %s313 = smul.addr %s310, 4
        %s314 = sadd.s32 %s312, %s313
        %s315 = smul.addr %s314, 4
        %s316 = scalar_lea.vmem %s2, %s315
        %p318 = scmp.eq.s32.totalorder %s26, 0
        // Predicated region
        $region41: #{attention_forward.3} parent=39 // pred_check
          %p319 = pneg %p318
        $region42: #{attention_forward.3} parent=39 // pred_check_branch
          %321 = sbr.rel (%p319) target = $region44
        $region43: #{attention_forward.3} parent=39 // pred_region
          %vm322 = vcmask 7168
          %323 = vst.msk [vmem:[#allocation2] sm:$0xff] %vm322, -inf
          %324 = vst.msk [vmem:[#allocation2 + $0x8] sm:$0xff] %vm322, -inf
          %325 = vst.msk [vmem:[#allocation2 + $0x10] sm:$0xff] %vm322, -inf
          %326 = vst.msk [vmem:[#allocation2 + $0x18] sm:$0xff] %vm322, -inf
          %327 = vst.msk [vmem:[#allocation3] sm:$0xff] %vm322, 0.0
          %328 = vst.msk [vmem:[#allocation3 + $0x8] sm:$0xff] %vm322, 0.0
          %329 = vst.msk [vmem:[#allocation3 + $0x10] sm:$0xff] %vm322, 0.0
          %330 = vst.msk [vmem:[#allocation3 + $0x18] sm:$0xff] %vm322, 0.0
          %vm331 = vcmask 64512
          %332 = vst.msk [vmem:[#allocation4] sm:$0xff] %vm331, 0.0
          %333 = vst.msk [vmem:[#allocation4 + $0x8] sm:$0xff] %vm331, 0.0
          %334 = vst.msk [vmem:[#allocation4 + $0x10] sm:$0xff] %vm331, 0.0
          %335 = vst.msk [vmem:[#allocation4 + $0x18] sm:$0xff] %vm331, 0.0
        $region44: #{attention_forward.3} parent=39 // pred_fallthru
          _
        %v336 = vld [vmem:[%s300] sm:$0xf]
        %v337 = vld [vmem:[%s300 + $0x4] sm:$0xf]
        %v338 = vld [vmem:[%s300 + $0x8] sm:$0xf]
        %v339 = vld [vmem:[%s300 + $0xc] sm:$0xf]
        %v340 = vld [vmem:[%s308] sm:$0xf]
        %v341 = vld [vmem:[%s308 + $0x4] sm:$0xf]
        %v342 = vld [vmem:[%s308 + $0x8] sm:$0xf]
        %v343 = vld [vmem:[%s308 + $0xc] sm:$0xf]
        %v344 = vld [vmem:[%s316] sm:$0xf]
        %v345 = vld [vmem:[%s316 + $0x4] sm:$0xf]
        %v346 = vld [vmem:[%s316 + $0x8] sm:$0xf]
        %v347 = vld [vmem:[%s316 + $0xc] sm:$0xf]
        %vm348 = vcmask 64512
        %v350 = vsel %vm348, %v336, 0
        %v353 = vsel %vm348, %v340, 0
        %355 = vmatpush.bf16.xpose.msra.mxu0 0
        %356 = vmatpush.bf16.xpose.msra.mxu0 0
        %357 = vmatpush.bf16.xpose.msra.mxu0 0
        %358 = vmatpush.bf16.xpose.msra.mxu0 0
        %359 = vmatpush.bf16.xpose.msra.mxu0 0
        %360 = vmatpush.bf16.xpose.msra.mxu0 0
        %361 = vmatpush.bf16.xpose.msra.mxu0 0
        %362 = vmatpush.bf16.xpose.msra.mxu0 %v353
        %363 = vmatmul.bf16.gmra.mxu0 %v350
        %v364 = vpop.f32.mrf.mxu0
        %v365 = vadd.f32 0.0, %v364
        %v366 = vpop.f32.mrf.mxu0
        %367 = vdwg.mxu0
        %v369 = vsel %vm348, %v337, 0
        %v372 = vsel %vm348, %v341, 0
        %374 = vmatpush.bf16.xpose.msra.mxu0 0
        %375 = vmatpush.bf16.xpose.msra.mxu0 0
        %376 = vmatpush.bf16.xpose.msra.mxu0 0
        %377 = vmatpush.bf16.xpose.msra.mxu0 0
        %378 = vmatpush.bf16.xpose.msra.mxu0 0
        %379 = vmatpush.bf16.xpose.msra.mxu0 0
        %380 = vmatpush.bf16.xpose.msra.mxu0 0
        %381 = vmatpush.bf16.xpose.msra.mxu0 %v372
        %382 = vmatmul.bf16.gmra.mxu0 %v369
        %v383 = vpop.f32.mrf.mxu0
        %v384 = vadd.f32 0.0, %v383
        %v385 = vpop.f32.mrf.mxu0
        %386 = vdwg.mxu0
        %v388 = vsel %vm348, %v338, 0
        %v391 = vsel %vm348, %v342, 0
        %393 = vmatpush.bf16.xpose.msra.mxu0 0
        %394 = vmatpush.bf16.xpose.msra.mxu0 0
        %395 = vmatpush.bf16.xpose.msra.mxu0 0
        %396 = vmatpush.bf16.xpose.msra.mxu0 0
        %397 = vmatpush.bf16.xpose.msra.mxu0 0
        %398 = vmatpush.bf16.xpose.msra.mxu0 0
        %399 = vmatpush.bf16.xpose.msra.mxu0 0
        %400 = vmatpush.bf16.xpose.msra.mxu0 %v391
        %401 = vmatmul.bf16.gmra.mxu0 %v388
        %v402 = vpop.f32.mrf.mxu0
        %v403 = vadd.f32 0.0, %v402
        %v404 = vpop.f32.mrf.mxu0
        %405 = vdwg.mxu0
        %v407 = vsel %vm348, %v339, 0
        %v410 = vsel %vm348, %v343, 0
        %412 = vmatpush.bf16.xpose.msra.mxu0 0
        %413 = vmatpush.bf16.xpose.msra.mxu0 0
        %414 = vmatpush.bf16.xpose.msra.mxu0 0
        %415 = vmatpush.bf16.xpose.msra.mxu0 0
        %416 = vmatpush.bf16.xpose.msra.mxu0 0
        %417 = vmatpush.bf16.xpose.msra.mxu0 0
        %418 = vmatpush.bf16.xpose.msra.mxu0 0
        %419 = vmatpush.bf16.xpose.msra.mxu0 %v410
        %420 = vmatmul.bf16.gmra.mxu0 %v407
        %v421 = vpop.f32.mrf.mxu0
        %v422 = vadd.f32 0.0, %v421
        %v423 = vpop.f32.mrf.mxu0
        %424 = vdwg.mxu0
        %v425 = vld [vmem:[#allocation2] sm:$0xff]
        %v426 = vld [vmem:[#allocation2 + $0x8] sm:$0xff]
        %v427 = vld [vmem:[#allocation2 + $0x10] sm:$0xff]
        %v428 = vld [vmem:[#allocation2 + $0x18] sm:$0xff]
        %v429 = vsel %vm348, %v365, -inf
        %430 = vmax.xlane.f32.xlu0 %v429
        %v431 = vpop.xlane.xlu0 %430
        %v432 = vsel %vm348, %v384, -inf
        %433 = vmax.xlane.f32.xlu0 %v432
        %v434 = vpop.xlane.xlu0 %433
        %v435 = vsel %vm348, %v403, -inf
        %436 = vmax.xlane.f32.xlu0 %v435
        %v437 = vpop.xlane.xlu0 %436
        %v438 = vsel %vm348, %v422, -inf
        %439 = vmax.xlane.f32.xlu0 %v438
        %v440 = vpop.xlane.xlu0 %439
        %v441 = vmax.f32 %v425, %v431
        %v442 = vmax.f32 %v426, %v434
        %v443 = vmax.f32 %v427, %v437
        %v444 = vmax.f32 %v428, %v440
        %v445 = vsub.f32 %v425, %v441
        %v446 = vsub.f32 %v426, %v442
        %v447 = vsub.f32 %v427, %v443
        %v448 = vsub.f32 %v428, %v444
        %v449 = vmul.f32 %v445, 1.442695
        %v450 = vpow.pop %v449
        %v451 = vmul.f32 %v446, 1.442695
        %v452 = vpow.pop %v451
        %v453 = vmul.f32 %v447, 1.442695
        %v454 = vpow.pop %v453
        %v455 = vmul.f32 %v448, 1.442695
        %v456 = vpow.pop %v455
        %458 = vset.pattern.permute.xlu0 0
        %459 = vperm.xlu0 %458, %v441
        %v460 = vpop.permute.xlu0 %459
        %463 = vset.pattern.permute.xlu0 0
        %464 = vperm.xlu0 %463, %v442
        %v465 = vpop.permute.xlu0 %464
        %468 = vset.pattern.permute.xlu0 0
        %469 = vperm.xlu0 %468, %v443
        %v470 = vpop.permute.xlu0 %469
        %473 = vset.pattern.permute.xlu0 0
        %474 = vperm.xlu0 %473, %v444
        %v475 = vpop.permute.xlu0 %474
        %v477 = vsub.f32 %v365, %v460
        %v478 = vsub.f32 %v384, %v465
        %v479 = vsub.f32 %v403, %v470
        %v480 = vsub.f32 %v422, %v475
        %v481 = vmul.f32 %v477, 1.442695
        %v482 = vpow.pop %v481
        %v483 = vmul.f32 %v478, 1.442695
        %v484 = vpow.pop %v483
        %v485 = vmul.f32 %v479, 1.442695
        %v486 = vpow.pop %v485
        %v487 = vmul.f32 %v480, 1.442695
        %v488 = vpow.pop %v487
        %v489 = vld [vmem:[#allocation3] sm:$0xff]
        %v490 = vld [vmem:[#allocation3 + $0x8] sm:$0xff]
        %v491 = vld [vmem:[#allocation3 + $0x10] sm:$0xff]
        %v492 = vld [vmem:[#allocation3 + $0x18] sm:$0xff]
        %v493 = vmul.f32 %v450, %v489
        %v494 = vmul.f32 %v452, %v490
        %v495 = vmul.f32 %v454, %v491
        %v496 = vmul.f32 %v456, %v492
        %v497 = vsel %vm348, %v482, 0.0
        %498 = vadd.xlane.f32.xlu0 %v497
        %v499 = vpop.xlane.xlu0 %498
        %v500 = vsel %vm348, %v484, 0.0
        %501 = vadd.xlane.f32.xlu0 %v500
        %v502 = vpop.xlane.xlu0 %501
        %v503 = vsel %vm348, %v486, 0.0
        %504 = vadd.xlane.f32.xlu0 %v503
        %v505 = vpop.xlane.xlu0 %504
        %v506 = vsel %vm348, %v488, 0.0
        %507 = vadd.xlane.f32.xlu0 %v506
        %v508 = vpop.xlane.xlu0 %507
        %v509 = vadd.f32 %v493, %v499
        %v510 = vadd.f32 %v494, %v502
        %v511 = vadd.f32 %v495, %v505
        %v512 = vadd.f32 %v496, %v508
        %vm513 = vcmask 7168
        %514 = vst.msk [vmem:[#allocation3] sm:$0xff] %vm513, %v509
        %515 = vst.msk [vmem:[#allocation3 + $0x8] sm:$0xff] %vm513, %v510
        %516 = vst.msk [vmem:[#allocation3 + $0x10] sm:$0xff] %vm513, %v511
        %517 = vst.msk [vmem:[#allocation3 + $0x18] sm:$0xff] %vm513, %v512
        %v518 = vpack.c.bf16 %v482, %v482
        %v519 = vpack.c.bf16 %v484, %v484
        %v520 = vpack.c.bf16 %v486, %v486
        %v521 = vpack.c.bf16 %v488, %v488
        %v523 = vsel %vm348, %v518, 0
        %vm525 = vcmask 1043456
        %v527 = vsel %vm525, %v344, 0
        %529 = vmatpush.bf16.msra.mxu0 0
        %530 = vmatpush.bf16.msra.mxu0 0
        %531 = vmatpush.bf16.msra.mxu0 0
        %532 = vmatpush.bf16.msra.mxu0 0
        %533 = vmatpush.bf16.msra.mxu0 0
        %534 = vmatpush.bf16.msra.mxu0 0
        %535 = vmatpush.bf16.msra.mxu0 0
        %536 = vmatpush.bf16.msra.mxu0 %v527
        %537 = vmatmul.bf16.gmra.mxu0 %v523
        %v538 = vpop.f32.mrf.mxu0
        %v539 = vadd.f32 0.0, %v538
        %v540 = vpop.f32.mrf.mxu0
        %541 = vdwg.mxu0
        %v543 = vsel %vm348, %v519, 0
        %v546 = vsel %vm525, %v345, 0
        %548 = vmatpush.bf16.msra.mxu0 0
        %549 = vmatpush.bf16.msra.mxu0 0
        %550 = vmatpush.bf16.msra.mxu0 0
        %551 = vmatpush.bf16.msra.mxu0 0
        %552 = vmatpush.bf16.msra.mxu0 0
        %553 = vmatpush.bf16.msra.mxu0 0
        %554 = vmatpush.bf16.msra.mxu0 0
        %555 = vmatpush.bf16.msra.mxu0 %v546
        %556 = vmatmul.bf16.gmra.mxu0 %v543
        %v557 = vpop.f32.mrf.mxu0
        %v558 = vadd.f32 0.0, %v557
        %v559 = vpop.f32.mrf.mxu0
        %560 = vdwg.mxu0
        %v562 = vsel %vm348, %v520, 0
        %v565 = vsel %vm525, %v346, 0
        %567 = vmatpush.bf16.msra.mxu0 0
        %568 = vmatpush.bf16.msra.mxu0 0
        %569 = vmatpush.bf16.msra.mxu0 0
        %570 = vmatpush.bf16.msra.mxu0 0
        %571 = vmatpush.bf16.msra.mxu0 0
        %572 = vmatpush.bf16.msra.mxu0 0
        %573 = vmatpush.bf16.msra.mxu0 0
        %574 = vmatpush.bf16.msra.mxu0 %v565
        %575 = vmatmul.bf16.gmra.mxu0 %v562
        %v576 = vpop.f32.mrf.mxu0
        %v577 = vadd.f32 0.0, %v576
        %v578 = vpop.f32.mrf.mxu0
        %579 = vdwg.mxu0
        %v581 = vsel %vm348, %v521, 0
        %v584 = vsel %vm525, %v347, 0
        %586 = vmatpush.bf16.msra.mxu0 0
        %587 = vmatpush.bf16.msra.mxu0 0
        %588 = vmatpush.bf16.msra.mxu0 0
        %589 = vmatpush.bf16.msra.mxu0 0
        %590 = vmatpush.bf16.msra.mxu0 0
        %591 = vmatpush.bf16.msra.mxu0 0
        %592 = vmatpush.bf16.msra.mxu0 0
        %593 = vmatpush.bf16.msra.mxu0 %v584
        %594 = vmatmul.bf16.gmra.mxu0 %v581
        %v595 = vpop.f32.mrf.mxu0
        %v596 = vadd.f32 0.0, %v595
        %v597 = vpop.f32.mrf.mxu0
        %598 = vdwg.mxu0
        %v599 = vld [vmem:[#allocation4] sm:$0xff]
        %v600 = vld [vmem:[#allocation4 + $0x8] sm:$0xff]
        %v601 = vld [vmem:[#allocation4 + $0x10] sm:$0xff]
        %v602 = vld [vmem:[#allocation4 + $0x18] sm:$0xff]
        %604 = vset.pattern.permute.xlu0 0
        %605 = vperm.xlu0 %604, %v450
        %v606 = vpop.permute.xlu0 %605
        %609 = vset.pattern.permute.xlu0 0
        %610 = vperm.xlu0 %609, %v452
        %v611 = vpop.permute.xlu0 %610
        %614 = vset.pattern.permute.xlu0 0
        %615 = vperm.xlu0 %614, %v454
        %v616 = vpop.permute.xlu0 %615
        %619 = vset.pattern.permute.xlu0 0
        %620 = vperm.xlu0 %619, %v456
        %v621 = vpop.permute.xlu0 %620
        %v623 = vmul.f32 %v606, %v599
        %v624 = vmul.f32 %v611, %v600
        %v625 = vmul.f32 %v616, %v601
        %v626 = vmul.f32 %v621, %v602
        %v627 = vadd.f32 %v623, %v539
        %v628 = vadd.f32 %v624, %v558
        %v629 = vadd.f32 %v625, %v577
        %v630 = vadd.f32 %v626, %v596
        %631 = vst.msk [vmem:[#allocation4] sm:$0xff] %vm348, %v627
        %632 = vst.msk [vmem:[#allocation4 + $0x8] sm:$0xff] %vm348, %v628
        %633 = vst.msk [vmem:[#allocation4 + $0x10] sm:$0xff] %vm348, %v629
        %634 = vst.msk [vmem:[#allocation4 + $0x18] sm:$0xff] %vm348, %v630
        %635 = vst.msk [vmem:[#allocation2] sm:$0xff] %vm513, %v441
        %636 = vst.msk [vmem:[#allocation2 + $0x8] sm:$0xff] %vm513, %v442
        %637 = vst.msk [vmem:[#allocation2 + $0x10] sm:$0xff] %vm513, %v443
        %638 = vst.msk [vmem:[#allocation2 + $0x18] sm:$0xff] %vm513, %v444
        // Predicated region
        $region45: #{attention_forward.3} parent=39 // pred_check
          %p639 = pneg %p318
        $region46: #{attention_forward.3} parent=39 // pred_check_branch
          %641 = sbr.rel (%p639) target = $region48
        $region47: #{attention_forward.3} parent=39 // pred_region
          %v642 = vld [vmem:[#allocation3] sm:$0xff]
          %v643 = vld [vmem:[#allocation3 + $0x8] sm:$0xff]
          %v644 = vld [vmem:[#allocation3 + $0x10] sm:$0xff]
          %v645 = vld [vmem:[#allocation3 + $0x18] sm:$0xff]
          %v646 = vrcp.pop %v642
          %v647 = vrcp.pop %v643
          %v648 = vrcp.pop %v644
          %v649 = vrcp.pop %v645
          %v650 = vld [vmem:[#allocation4] sm:$0xff]
          %v651 = vld [vmem:[#allocation4 + $0x8] sm:$0xff]
          %v652 = vld [vmem:[#allocation4 + $0x10] sm:$0xff]
          %v653 = vld [vmem:[#allocation4 + $0x18] sm:$0xff]
          %655 = vset.pattern.permute.xlu0 0
          %656 = vperm.xlu0 %655, %v646
          %v657 = vpop.permute.xlu0 %656
          %660 = vset.pattern.permute.xlu0 0
          %661 = vperm.xlu0 %660, %v647
          %v662 = vpop.permute.xlu0 %661
          %665 = vset.pattern.permute.xlu0 0
          %666 = vperm.xlu0 %665, %v648
          %v667 = vpop.permute.xlu0 %666
          %670 = vset.pattern.permute.xlu0 0
          %671 = vperm.xlu0 %670, %v649
          %v672 = vpop.permute.xlu0 %671
          %v674 = vmul.f32 %v650, %v657
          %v675 = vmul.f32 %v651, %v662
          %v676 = vmul.f32 %v652, %v667
          %v677 = vmul.f32 %v653, %v672
          %v678 = vpack.c.bf16 %v674, %v674
          %v679 = vpack.c.bf16 %v675, %v675
          %v680 = vpack.c.bf16 %v676, %v676
          %v681 = vpack.c.bf16 %v677, %v677
          %v682 = vld [vmem:[%s3] sm:$0xf]
          %v683 = vld [vmem:[%s3 + $0x4] sm:$0xf]
          %v684 = vld [vmem:[%s3 + $0x8] sm:$0xf]
          %v685 = vld [vmem:[%s3 + $0xc] sm:$0xf]
          %v687 = vsel %vm348, %v678, 0
          %v690 = vsel %vm525, %v682, 0
          %692 = vmatpush.bf16.msra.mxu0 0
          %693 = vmatpush.bf16.msra.mxu0 0
          %694 = vmatpush.bf16.msra.mxu0 0
          %695 = vmatpush.bf16.msra.mxu0 0
          %696 = vmatpush.bf16.msra.mxu0 0
          %697 = vmatpush.bf16.msra.mxu0 0
          %698 = vmatpush.bf16.msra.mxu0 0
          %699 = vmatpush.bf16.msra.mxu0 %v690
          %700 = vmatmul.bf16.gmra.mxu0 %v687
          %v701 = vpop.f32.mrf.mxu0
          %v702 = vadd.f32 0.0, %v701
          %v703 = vpop.f32.mrf.mxu0
          %704 = vdwg.mxu0
          %v706 = vsel %vm348, %v679, 0
          %v709 = vsel %vm525, %v683, 0
          %711 = vmatpush.bf16.msra.mxu0 0
          %712 = vmatpush.bf16.msra.mxu0 0
          %713 = vmatpush.bf16.msra.mxu0 0
          %714 = vmatpush.bf16.msra.mxu0 0
          %715 = vmatpush.bf16.msra.mxu0 0
          %716 = vmatpush.bf16.msra.mxu0 0
          %717 = vmatpush.bf16.msra.mxu0 0
          %718 = vmatpush.bf16.msra.mxu0 %v709
          %719 = vmatmul.bf16.gmra.mxu0 %v706
          %v720 = vpop.f32.mrf.mxu0
          %v721 = vadd.f32 0.0, %v720
          %v722 = vpop.f32.mrf.mxu0
          %723 = vdwg.mxu0
          %v725 = vsel %vm348, %v680, 0
          %v728 = vsel %vm525, %v684, 0
          %730 = vmatpush.bf16.msra.mxu0 0
          %731 = vmatpush.bf16.msra.mxu0 0
          %732 = vmatpush.bf16.msra.mxu0 0
          %733 = vmatpush.bf16.msra.mxu0 0
          %734 = vmatpush.bf16.msra.mxu0 0
          %735 = vmatpush.bf16.msra.mxu0 0
          %736 = vmatpush.bf16.msra.mxu0 0
          %737 = vmatpush.bf16.msra.mxu0 %v728
          %738 = vmatmul.bf16.gmra.mxu0 %v725
          %v739 = vpop.f32.mrf.mxu0
          %v740 = vadd.f32 0.0, %v739
          %v741 = vpop.f32.mrf.mxu0
          %742 = vdwg.mxu0
          %v744 = vsel %vm348, %v681, 0
          %v747 = vsel %vm525, %v685, 0
          %749 = vmatpush.bf16.msra.mxu0 0
          %750 = vmatpush.bf16.msra.mxu0 0
          %751 = vmatpush.bf16.msra.mxu0 0
          %752 = vmatpush.bf16.msra.mxu0 0
          %753 = vmatpush.bf16.msra.mxu0 0
          %754 = vmatpush.bf16.msra.mxu0 0
          %755 = vmatpush.bf16.msra.mxu0 0
          %756 = vmatpush.bf16.msra.mxu0 %v747
          %757 = vmatmul.bf16.gmra.mxu0 %v744
          %v758 = vpop.f32.mrf.mxu0
          %v759 = vadd.f32 0.0, %v758
          %v760 = vpop.f32.mrf.mxu0
          %761 = vdwg.mxu0
          %vm762 = vcmask 261120
          %v763 = vsel %vm762, %v702, 0.0
          %v764 = vsel %vm762, %v721, 0.0
          %v765 = vadd.f32 %v763, %v764
          %v766 = vsel %vm762, %v740, 0.0
          %v767 = vadd.f32 %v765, %v766
          %v768 = vsel %vm762, %v759, 0.0
          %v769 = vadd.f32 %v767, %v768
          %v770 = vld [vmem:[%s4] sm:$0x1]
          %v772 = vperm.slane %v770, 0
          %v774 = vadd.f32 %v769, %v772
          %775 = vst.msk [vmem:[%s292] sm:$0xff] %vm762, %v774
        $region48: #{attention_forward.3} parent=39 // pred_fallthru
          _
        %s776 = sand.u32 %s174, 1
        %s777 = scalar_lea.sflag [#allocation6], %s776
        %s778 = sand.u32 %s174, 1
        %s779 = smul.addr %s778, 8
        %s780 = scalar_lea.vmem [#allocation5], %s779
        // Predicated region
        $region49: #{attention_forward.3} parent=39 // pred_check
          %p781 = pneg %p184
        $region50: #{attention_forward.3} parent=39 // pred_check_branch
          %783 = sbr.rel (%p781) target = $region52
        $region51: #{attention_forward.3} parent=39 // pred_region
          %785 = vsyncadd %s777, 0
          %s786 = sadd.s32 %s25, %s24
          %s787 = smul.addr %s786, 8
          %s788 = scalar_lea.hbm %s5, %s787
          %s790 = sshll.u32 %s780, 4
          %s791 = int_to_ptr.vmem [resolvable:$true] %s790
          %s792 = sshll.u32 %s788, 4
          %s793 = int_to_ptr.hbm [resolvable:$true] %s792
          %795 = dma.vmem_to_hbm [thread:$0]  %s791, 128, %s793, %s777
        $region52: #{attention_forward.3} parent=39 // pred_fallthru
          _
      $region40: #{attention_forward.3} parent=5 // pred_fallthru
        _
      %p796 = scmp.le.s32.totalorder 2, %s14
      // Predicated region
      $region53: #{attention_forward.3} parent=5 // pred_check
        %p797 = pneg %p796
      $region54: #{attention_forward.3} parent=5 // pred_check_branch
        %799 = sbr.rel (%p797) target = $region56
      $region55: #{attention_forward.3} parent=5 // pred_region
        %s800 = ssub.s32 %s14, 2
        // Predicated region
        $region57: #{attention_forward.3} parent=55 // pred_check
          %p801 = pneg %p190
        $region58: #{attention_forward.3} parent=55 // pred_check_branch
          %803 = sbr.rel (%p801) target = $region60
        $region59: #{attention_forward.3} parent=55 // pred_region
          %s804 = sand.u32 %s175, 1
          %s805 = scalar_lea.sflag [#allocation6], %s804
          %s806 = sand.u32 %s175, 1
          %s807 = smul.addr %s806, 8
          %s808 = scalar_lea.vmem [#allocation5], %s807
          %810 = dma.done %s805, 128
        $region60: #{attention_forward.3} parent=55 // pred_fallthru
          _
      $region56: #{attention_forward.3} parent=5 // pred_fallthru
        _
    $region6: #{attention_forward.3} parent=1 // loop_footer
      %s18 = sadd.s32 1, %s14
    $region7: #{attention_forward.3} parent=1 // loop_footer_branch
      %13 = sbr.rel target = $region3
    $region8: #{attention_forward.3} parent=1 // loop_exit
      _
    %811 = vsyncpa [#allocation6], 1
    %s812 = scalar_lea.sflag [#allocation6], 1
    %813 = vsyncpa %s812, 1

</llo_original>
